<compile_context>
chip_gen: v7x
topology: tpu7x:2x2x1
jax: 0.10.0
libtpu: 0.0.40
codegen_flags: <defaults>
</compile_context>

<pallas_src>
import jax
import jax.numpy as jnp
from jax import lax
from jax.experimental import pallas as pl
from jax.experimental.pallas import tpu as pltpu

EPS = 1e-5
C_TOTAL = 1184


def fused_kernel(x536_ref, w_ref, p0_ref, small_ref, gamma_ref, beta_ref,
                 out_ref, xpad_ref):
    rows = out_ref.shape[0]                                   # 49 = N*H*W
    inv_n = 1.0 / rows

    # ---- zero-padded conv input built in VMEM scratch (no wrapper-side pad) ----
    # real activation rows live at row offset 8, so every H-boundary tap reads zeros.
    xpad_ref[...] = jnp.zeros_like(xpad_ref)
    xpad_ref[8:8 + rows, :] = x536_ref[...]

    # per-output-row masks for W-boundary taps (kw=0 invalid at ow==0, kw=2 at ow==6)
    ow = lax.broadcasted_iota(jnp.int32, (rows, 1), 0) % 7
    mask_l = (ow != 0).astype(jnp.float32)
    mask_r = (ow != 6).astype(jnp.float32)

    # ---- 3x3 / pad-1 conv as 3 merged-K MXU matmuls: [49,384] @ [384,32] ----
    acc = jnp.zeros((rows, 32), jnp.float32)
    for kh in range(3):
        base = 8 + 7 * (kh - 1)
        wl = xpad_ref[base - 1: base - 1 + rows, :] * mask_l   # kw = 0 tap
        wc = xpad_ref[base: base + rows, :]                    # kw = 1 tap
        wr = xpad_ref[base + 1: base + 1 + rows, :] * mask_r   # kw = 2 tap
        xk = jnp.concatenate([wl, wc, wr], axis=1)             # [49, 384]
        acc = acc + jnp.dot(xk, w_ref[kh], preferred_element_type=jnp.float32)

    # ---- slab-wise training-mode batchnorm (biased var over the 49 positions) ----
    def bn_store(x, c0):
        cw = x.shape[1]
        g = gamma_ref[:, c0:c0 + cw]
        b = beta_ref[:, c0:c0 + cw]
        s1 = jnp.sum(x, axis=0, keepdims=True)                 # [1, cw]
        s2 = jnp.sum(x * x, axis=0, keepdims=True)             # [1, cw]
        mean = s1 * inv_n
        var = s2 * inv_n - mean * mean
        scale = g * lax.rsqrt(var + EPS)                       # folded affine
        shift = b - mean * scale
        out_ref[:, c0:c0 + cw] = x * scale + shift             # lane-aligned store

    # channels 1024:1152 = x516 | x523 | x530 | conv   (uses acc; done first)
    bn_store(jnp.concatenate([small_ref[4], small_ref[5], small_ref[6], acc],
                             axis=1), 1024)
    # channels  896:1024 = x488 | x495 | x502 | x509
    bn_store(jnp.concatenate([small_ref[0], small_ref[1], small_ref[2],
                              small_ref[3]], axis=1), 896)
    # channels 1152:1184 = x544
    bn_store(small_ref[7], 1152)
    # channels    0:896  = x481, processed as 7 lane-aligned 128-wide slabs
    for t in range(7):
        bn_store(p0_ref[:, 128 * t: 128 * (t + 1)], 128 * t)


def pack_conv_weight(conv_w):
    """[O, I, KH, KW] -> [KH, KW*I, O] so xk = [kw0|kw1|kw2] windows matches."""
    o, i, kh, kw = conv_w.shape
    return jnp.transpose(conv_w, (2, 3, 1, 0)).reshape(kh, kw * i, o)


@jax.jit
def module_forward(x536, x481, x488, x495, x502, x509, x516, x523, x530, x544,
                   w_packed, bn_gamma, bn_beta):
    """Activations in PyTorch NCHW; w_packed is pack_conv_weight(conv_w) [3,384,32]."""
    n, cin, h, w = x536.shape
    assert n == 1 and h == 7 and w == 7 and cin == 128
    rows = n * h * w                                           # 49

    def rows_of(t):                                            # NCHW -> [49, C]
        return jnp.transpose(t, (0, 2, 3, 1)).reshape(rows, t.shape[1])

    x536_rows = rows_of(x536)                                  # [49, 128]
    p0 = rows_of(x481)                                         # [49, 896]
    # the eight 32-channel tensors as one stacked rows-form tensor [8, 49, 32]
    small = jnp.transpose(
        jnp.concatenate([x488, x495, x502, x509, x516, x523, x530, x544], axis=0),
        (0, 2, 3, 1)).reshape(8, rows, 32)

    gamma2d = bn_gamma.reshape(1, C_TOTAL)
    beta2d = bn_beta.reshape(1, C_TOTAL)

    out_rows = pl.pallas_call(
        fused_kernel,
        out_shape=jax.ShapeDtypeStruct((rows, C_TOTAL), jnp.float32),
        grid=(1,),
        in_specs=[
            pl.BlockSpec(x536_rows.shape, lambda i: (0, 0)),
            pl.BlockSpec(w_packed.shape, lambda i: (0, 0, 0)),
            pl.BlockSpec(p0.shape, lambda i: (0, 0)),
            pl.BlockSpec(small.shape, lambda i: (0, 0, 0)),
            pl.BlockSpec(gamma2d.shape, lambda i: (0, 0)),
            pl.BlockSpec(beta2d.shape, lambda i: (0, 0)),
        ],
        out_specs=pl.BlockSpec((rows, C_TOTAL), lambda i: (0, 0)),
        scratch_shapes=[pltpu.VMEM((72, 128), jnp.float32)],
        compiler_params=pltpu.CompilerParams(
            dimension_semantics=("arbitrary",)),
    )(x536_rows, w_packed, p0, small, gamma2d, beta2d)

    return jnp.transpose(out_rows.reshape(n, h, w, C_TOTAL), (0, 3, 1, 2))


def _reference(x536, x481, x488, x495, x502, x509, x516, x523, x530, x544,
               conv_w, bn_gamma, bn_beta):
    conv = lax.conv_general_dilated(
        x536, conv_w, window_strides=(1, 1), padding=((1, 1), (1, 1)),
        dimension_numbers=("NCHW", "OIHW", "NCHW"))
    cat = jnp.concatenate(
        [x481, x488, x495, x502, x509, x516, x523, x530, conv, x544], axis=1)
    mean = jnp.mean(cat, axis=(0, 2, 3), keepdims=True)
    var = jnp.mean((cat - mean) ** 2, axis=(0, 2, 3), keepdims=True)
    g = bn_gamma.reshape(1, -1, 1, 1)
    b = bn_beta.reshape(1, -1, 1, 1)
    return (cat - mean) * lax.rsqrt(var + EPS) * g + b


if __name__ == "__main__":
    key = jax.random.PRNGKey(0)
    keys = jax.random.split(key, 13)

    x481 = jax.random.normal(keys[0], (1, 896, 7, 7), jnp.float32)
    x488 = jax.random.normal(keys[1], (1, 32, 7, 7), jnp.float32)
    x495 = jax.random.normal(keys[2], (1, 32, 7, 7), jnp.float32)
    x502 = jax.random.normal(keys[3], (1, 32, 7, 7), jnp.float32)
    x509 = jax.random.normal(keys[4], (1, 32, 7, 7), jnp.float32)
    x516 = jax.random.normal(keys[5], (1, 32, 7, 7), jnp.float32)
    x523 = jax.random.normal(keys[6], (1, 32, 7, 7), jnp.float32)
    x530 = jax.random.normal(keys[7], (1, 32, 7, 7), jnp.float32)
    x536 = jax.random.normal(keys[8], (1, 128, 7, 7), jnp.float32)
    x544 = jax.random.normal(keys[9], (1, 32, 7, 7), jnp.float32)

    # Parameters (shapes from the module's __init__); gamma/beta non-trivial so
    # the per-slab affine slicing is actually exercised by the check.
    conv_w = 0.05 * jax.random.normal(keys[10], (32, 128, 3, 3), jnp.float32)
    bn_gamma = 1.0 + 0.1 * jax.random.normal(keys[11], (C_TOTAL,), jnp.float32)
    bn_beta = 0.1 * jax.random.normal(keys[12], (C_TOTAL,), jnp.float32)

    # One-time weight packing (hoisted out of the per-call path).
    w_packed = pack_conv_weight(conv_w)

    out = jax.block_until_ready(module_forward(
        x536, x481, x488, x495, x502, x509, x516, x523, x530, x544,
        w_packed, bn_gamma, bn_beta))
    ref = jax.block_until_ready(_reference(
        x536, x481, x488, x495, x502, x509, x516, x523, x530, x544,
        conv_w, bn_gamma, bn_beta))

    assert out.shape == (1, C_TOTAL, 7, 7), out.shape
    assert jnp.allclose(out, ref, atol=1e-4, rtol=1e-4), float(jnp.max(jnp.abs(out - ref)))
    print("KERNEL_OK")
</pallas_src>

<mosaic_0001>
module attributes {stable_mosaic.version = 11 : i64} {
  func.func @fused_kernel(%arg0: i32, %arg1: memref<49x128xf32, #tpu.memory_space<vmem>>, %arg2: memref<3x384x32xf32, #tpu.memory_space<vmem>>, %arg3: memref<49x896xf32, #tpu.memory_space<vmem>>, %arg4: memref<8x49x32xf32, #tpu.memory_space<vmem>>, %arg5: memref<1x1184xf32, #tpu.memory_space<vmem>>, %arg6: memref<1x1184xf32, #tpu.memory_space<vmem>>, %arg7: memref<49x1184xf32, #tpu.memory_space<vmem>>, %arg8: memref<72x128xf32, #tpu.memory_space<vmem>>) attributes {dimension_semantics = [#tpu.dimension_semantics<arbitrary>], iteration_bounds = array<i64: 1>, scalar_prefetch = 0 : i64, scratch_operands = 1 : i64, tpu.core_type = #tpu.core_type<tc>, window_params = [{pipeline_mode = #tpu.pipeline_mode<synchronous>, transform_indices = @transform_0, window_bounds = array<i64: 49, 128>}, {pipeline_mode = #tpu.pipeline_mode<synchronous>, transform_indices = @transform_1, window_bounds = array<i64: 3, 384, 32>}, {pipeline_mode = #tpu.pipeline_mode<synchronous>, transform_indices = @transform_2, window_bounds = array<i64: 49, 896>}, {pipeline_mode = #tpu.pipeline_mode<synchronous>, transform_indices = @transform_3, window_bounds = array<i64: 8, 49, 32>}, {pipeline_mode = #tpu.pipeline_mode<synchronous>, transform_indices = @transform_4, window_bounds = array<i64: 1, 1184>}, {pipeline_mode = #tpu.pipeline_mode<synchronous>, transform_indices = @transform_5, window_bounds = array<i64: 1, 1184>}, {pipeline_mode = #tpu.pipeline_mode<synchronous>, transform_indices = @transform_6, window_bounds = array<i64: 49, 1184>}]} {
    %cst = arith.constant 0.000000e+00 : f32
    %0 = vector.broadcast %cst : f32 to vector<72x128xf32>
    %c0 = arith.constant 0 : index
    %c0_0 = arith.constant 0 : index
    %1 = vector.load %arg8[%c0, %c0_0] : memref<72x128xf32, #tpu.memory_space<vmem>>, vector<72x128xf32>
    tpu.vector_store %arg8[%c0, %c0_0], %0 {strides = array<i32>} : memref<72x128xf32, #tpu.memory_space<vmem>>, vector<72x128xf32>,
    %c0_1 = arith.constant 0 : index
    %c0_2 = arith.constant 0 : index
    %2 = vector.load %arg1[%c0_1, %c0_2] : memref<49x128xf32, #tpu.memory_space<vmem>>, vector<49x128xf32>
    %c8 = arith.constant 8 : index
    %c0_3 = arith.constant 0 : index
    %3 = vector.load %arg8[%c8, %c0_3] : memref<72x128xf32, #tpu.memory_space<vmem>>, vector<49x128xf32>
    tpu.vector_store %arg8[%c8, %c0_3], %2 {strides = array<i32>} : memref<72x128xf32, #tpu.memory_space<vmem>>, vector<49x128xf32>,
    %4 = tpu.iota {dimensions = array<i32: 0>} : vector<49x1xi32>
    %c7_i32 = arith.constant 7 : i32
    %c0_i32 = arith.constant 0 : i32
    %5 = arith.cmpi eq, %c7_i32, %c0_i32 : i32
    %c1_i32 = arith.constant 1 : i32
    %6 = arith.select %5, %c1_i32, %c7_i32 : i32
    %7 = vector.broadcast %6 : i32 to vector<49x1xi32>
    %8 = arith.remsi %4, %7 : vector<49x1xi32>
    %c0_i32_4 = arith.constant 0 : i32
    %9 = vector.broadcast %c0_i32_4 : i32 to vector<49x1xi32>
    %10 = arith.cmpi ne, %8, %9 : vector<49x1xi32>
    %c0_i32_5 = arith.constant 0 : i32
    %11 = vector.broadcast %c0_i32_5 : i32 to vector<49x1xi32>
    %12 = arith.cmpi slt, %8, %11 : vector<49x1xi32>
    %c0_i32_6 = arith.constant 0 : i32
    %13 = arith.cmpi slt, %6, %c0_i32_6 : i32
    %14 = vector.broadcast %13 : i1 to vector<49x1xi1>
    %15 = vector.broadcast %14 : vector<49x1xi1> to vector<49x1xi1>
    %16 = arith.xori %12, %15 : vector<49x1xi1>
    %17 = arith.andi %16, %10 : vector<49x1xi1>
    %18 = vector.broadcast %6 : i32 to vector<49x1xi32>
    %19 = arith.addi %8, %18 : vector<49x1xi32>
    %20 = arith.select %17, %19, %8 : vector<49x1xi1>, vector<49x1xi32>
    %c0_i32_7 = arith.constant 0 : i32
    %21 = vector.broadcast %c0_i32_7 : i32 to vector<49x1xi32>
    %22 = arith.cmpi ne, %20, %21 : vector<49x1xi32>
    %23 = arith.extui %22 : vector<49x1xi1> to vector<49x1xi32>
    %24 = arith.sitofp %23 : vector<49x1xi32> to vector<49x1xf32>
    %c6_i32 = arith.constant 6 : i32
    %25 = vector.broadcast %c6_i32 : i32 to vector<49x1xi32>
    %26 = arith.cmpi ne, %20, %25 : vector<49x1xi32>
    %27 = arith.extui %26 : vector<49x1xi1> to vector<49x1xi32>
    %28 = arith.sitofp %27 : vector<49x1xi32> to vector<49x1xf32>
    %cst_8 = arith.constant 0.000000e+00 : f32
    %29 = vector.broadcast %cst_8 : f32 to vector<49x32xf32>
    %c0_9 = arith.constant 0 : index
    %c0_10 = arith.constant 0 : index
    %30 = vector.load %arg8[%c0_9, %c0_10] : memref<72x128xf32, #tpu.memory_space<vmem>>, vector<49x128xf32>
    %31 = vector.broadcast %24 : vector<49x1xf32> to vector<49x128xf32>
    %32 = arith.mulf %30, %31 : vector<49x128xf32>
    %c1 = arith.constant 1 : index
    %c0_11 = arith.constant 0 : index
    %33 = vector.load %arg8[%c1, %c0_11] : memref<72x128xf32, #tpu.memory_space<vmem>>, vector<49x128xf32>
    %c2 = arith.constant 2 : index
    %c0_12 = arith.constant 0 : index
    %34 = vector.load %arg8[%c2, %c0_12] : memref<72x128xf32, #tpu.memory_space<vmem>>, vector<49x128xf32>
    %35 = vector.broadcast %28 : vector<49x1xf32> to vector<49x128xf32>
    %36 = arith.mulf %34, %35 : vector<49x128xf32>
    %37 = tpu.concatenate %32, %33, %36 in 1 : vector<49x128xf32>, vector<49x128xf32>, vector<49x128xf32> -> vector<49x384xf32>
    %c0_13 = arith.constant 0 : index
    %c0_14 = arith.constant 0 : index
    %c0_15 = arith.constant 0 : index
    %38 = vector.load %arg2[%c0_13, %c0_14, %c0_15] : memref<3x384x32xf32, #tpu.memory_space<vmem>>, vector<1x384x32xf32>
    %39 = vector.shape_cast %38 : vector<1x384x32xf32> to vector<384x32xf32>
    %cst_16 = arith.constant dense<0.000000e+00> : vector<49x32xf32>
    %40 = tpu.matmul %37, %39, %cst_16 {dimension_numbers = #tpu.dot_dimension_numbers<[1], [0], [0], [1], [0, 0, 1, 1], [], []>} : vector<49x384xf32>, vector<384x32xf32>, vector<49x32xf32> -> vector<49x32xf32>
    %41 = arith.addf %29, %40 : vector<49x32xf32>
    %c7 = arith.constant 7 : index
    %c0_17 = arith.constant 0 : index
    %42 = vector.load %arg8[%c7, %c0_17] : memref<72x128xf32, #tpu.memory_space<vmem>>, vector<49x128xf32>
    %43 = vector.broadcast %24 : vector<49x1xf32> to vector<49x128xf32>
    %44 = arith.mulf %42, %43 : vector<49x128xf32>
    %c8_18 = arith.constant 8 : index
    %c0_19 = arith.constant 0 : index
    %45 = vector.load %arg8[%c8_18, %c0_19] : memref<72x128xf32, #tpu.memory_space<vmem>>, vector<49x128xf32>
    %c9 = arith.constant 9 : index
    %c0_20 = arith.constant 0 : index
    %46 = vector.load %arg8[%c9, %c0_20] : memref<72x128xf32, #tpu.memory_space<vmem>>, vector<49x128xf32>
    %47 = vector.broadcast %28 : vector<49x1xf32> to vector<49x128xf32>
    %48 = arith.mulf %46, %47 : vector<49x128xf32>
    %49 = tpu.concatenate %44, %45, %48 in 1 : vector<49x128xf32>, vector<49x128xf32>, vector<49x128xf32> -> vector<49x384xf32>
    %c1_21 = arith.constant 1 : index
    %c0_22 = arith.constant 0 : index
    %c0_23 = arith.constant 0 : index
    %50 = vector.load %arg2[%c1_21, %c0_22, %c0_23] : memref<3x384x32xf32, #tpu.memory_space<vmem>>, vector<1x384x32xf32>
    %51 = vector.shape_cast %50 : vector<1x384x32xf32> to vector<384x32xf32>
    %cst_24 = arith.constant dense<0.000000e+00> : vector<49x32xf32>
    %52 = tpu.matmul %49, %51, %cst_24 {dimension_numbers = #tpu.dot_dimension_numbers<[1], [0], [0], [1], [0, 0, 1, 1], [], []>} : vector<49x384xf32>, vector<384x32xf32>, vector<49x32xf32> -> vector<49x32xf32>
    %53 = arith.addf %41, %52 : vector<49x32xf32>
    %c14 = arith.constant 14 : index
    %c0_25 = arith.constant 0 : index
    %54 = vector.load %arg8[%c14, %c0_25] : memref<72x128xf32, #tpu.memory_space<vmem>>, vector<49x128xf32>
    %55 = vector.broadcast %24 : vector<49x1xf32> to vector<49x128xf32>
    %56 = arith.mulf %54, %55 : vector<49x128xf32>
    %c15 = arith.constant 15 : index
    %c0_26 = arith.constant 0 : index
    %57 = vector.load %arg8[%c15, %c0_26] : memref<72x128xf32, #tpu.memory_space<vmem>>, vector<49x128xf32>
    %c16 = arith.constant 16 : index
    %c0_27 = arith.constant 0 : index
    %58 = vector.load %arg8[%c16, %c0_27] : memref<72x128xf32, #tpu.memory_space<vmem>>, vector<49x128xf32>
    %59 = vector.broadcast %28 : vector<49x1xf32> to vector<49x128xf32>
    %60 = arith.mulf %58, %59 : vector<49x128xf32>
    %61 = tpu.concatenate %56, %57, %60 in 1 : vector<49x128xf32>, vector<49x128xf32>, vector<49x128xf32> -> vector<49x384xf32>
    %c2_28 = arith.constant 2 : index
    %c0_29 = arith.constant 0 : index
    %c0_30 = arith.constant 0 : index
    %62 = vector.load %arg2[%c2_28, %c0_29, %c0_30] : memref<3x384x32xf32, #tpu.memory_space<vmem>>, vector<1x384x32xf32>
    %63 = vector.shape_cast %62 : vector<1x384x32xf32> to vector<384x32xf32>
    %cst_31 = arith.constant dense<0.000000e+00> : vector<49x32xf32>
    %64 = tpu.matmul %61, %63, %cst_31 {dimension_numbers = #tpu.dot_dimension_numbers<[1], [0], [0], [1], [0, 0, 1, 1], [], []>} : vector<49x384xf32>, vector<384x32xf32>, vector<49x32xf32> -> vector<49x32xf32>
    %65 = arith.addf %53, %64 : vector<49x32xf32>
    %c4 = arith.constant 4 : index
    %c0_32 = arith.constant 0 : index
    %c0_33 = arith.constant 0 : index
    %66 = vector.load %arg4[%c4, %c0_32, %c0_33] : memref<8x49x32xf32, #tpu.memory_space<vmem>>, vector<1x49x32xf32>
    %67 = vector.shape_cast %66 : vector<1x49x32xf32> to vector<49x32xf32>
    %c5 = arith.constant 5 : index
    %c0_34 = arith.constant 0 : index
    %c0_35 = arith.constant 0 : index
    %68 = vector.load %arg4[%c5, %c0_34, %c0_35] : memref<8x49x32xf32, #tpu.memory_space<vmem>>, vector<1x49x32xf32>
    %69 = vector.shape_cast %68 : vector<1x49x32xf32> to vector<49x32xf32>
    %c6 = arith.constant 6 : index
    %c0_36 = arith.constant 0 : index
    %c0_37 = arith.constant 0 : index
    %70 = vector.load %arg4[%c6, %c0_36, %c0_37] : memref<8x49x32xf32, #tpu.memory_space<vmem>>, vector<1x49x32xf32>
    %71 = vector.shape_cast %70 : vector<1x49x32xf32> to vector<49x32xf32>
    %72 = tpu.concatenate %67, %69, %71, %65 in 1 : vector<49x32xf32>, vector<49x32xf32>, vector<49x32xf32>, vector<49x32xf32> -> vector<49x128xf32>
    %c0_38 = arith.constant 0 : index
    %c1024 = arith.constant 1024 : index
    %73 = vector.load %arg5[%c0_38, %c1024] : memref<1x1184xf32, #tpu.memory_space<vmem>>, vector<1x128xf32>
    %c0_39 = arith.constant 0 : index
    %c1024_40 = arith.constant 1024 : index
    %74 = vector.load %arg6[%c0_39, %c1024_40] : memref<1x1184xf32, #tpu.memory_space<vmem>>, vector<1x128xf32>
    %cst_41 = arith.constant dense<0.000000e+00> : vector<128xf32>
    %75 = vector.multi_reduction <add>, %72, %cst_41 [0] : vector<49x128xf32> to vector<128xf32>
    %76 = vector.shape_cast %75 : vector<128xf32> to vector<1x128xf32>
    %77 = arith.mulf %72, %72 : vector<49x128xf32>
    %cst_42 = arith.constant dense<0.000000e+00> : vector<128xf32>
    %78 = vector.multi_reduction <add>, %77, %cst_42 [0] : vector<49x128xf32> to vector<128xf32>
    %79 = vector.shape_cast %78 : vector<128xf32> to vector<1x128xf32>
    %cst_43 = arith.constant 0.0204081628 : f32
    %80 = vector.broadcast %cst_43 : f32 to vector<1x128xf32>
    %81 = arith.mulf %76, %80 : vector<1x128xf32>
    %cst_44 = arith.constant 0.0204081628 : f32
    %82 = vector.broadcast %cst_44 : f32 to vector<1x128xf32>
    %83 = arith.mulf %79, %82 : vector<1x128xf32>
    %84 = arith.mulf %81, %81 : vector<1x128xf32>
    %85 = arith.subf %83, %84 : vector<1x128xf32>
    %cst_45 = arith.constant 9.99999974E-6 : f32
    %86 = vector.broadcast %cst_45 : f32 to vector<1x128xf32>
    %87 = arith.addf %85, %86 : vector<1x128xf32>
    %88 = math.rsqrt %87 : vector<1x128xf32>
    %89 = arith.mulf %73, %88 : vector<1x128xf32>
    %90 = arith.mulf %81, %89 : vector<1x128xf32>
    %91 = arith.subf %74, %90 : vector<1x128xf32>
    %92 = vector.broadcast %89 : vector<1x128xf32> to vector<49x128xf32>
    %93 = arith.mulf %72, %92 : vector<49x128xf32>
    %94 = vector.broadcast %91 : vector<1x128xf32> to vector<49x128xf32>
    %95 = arith.addf %93, %94 : vector<49x128xf32>
    %c0_46 = arith.constant 0 : index
    %c1024_47 = arith.constant 1024 : index
    %96 = vector.load %arg7[%c0_46, %c1024_47] : memref<49x1184xf32, #tpu.memory_space<vmem>>, vector<49x128xf32>
    tpu.vector_store %arg7[%c0_46, %c1024_47], %95 {strides = array<i32>} : memref<49x1184xf32, #tpu.memory_space<vmem>>, vector<49x128xf32>,
    %c0_48 = arith.constant 0 : index
    %c0_49 = arith.constant 0 : index
    %c0_50 = arith.constant 0 : index
    %97 = vector.load %arg4[%c0_48, %c0_49, %c0_50] : memref<8x49x32xf32, #tpu.memory_space<vmem>>, vector<1x49x32xf32>
    %98 = vector.shape_cast %97 : vector<1x49x32xf32> to vector<49x32xf32>
    %c1_51 = arith.constant 1 : index
    %c0_52 = arith.constant 0 : index
    %c0_53 = arith.constant 0 : index
    %99 = vector.load %arg4[%c1_51, %c0_52, %c0_53] : memref<8x49x32xf32, #tpu.memory_space<vmem>>, vector<1x49x32xf32>
    %100 = vector.shape_cast %99 : vector<1x49x32xf32> to vector<49x32xf32>
    %c2_54 = arith.constant 2 : index
    %c0_55 = arith.constant 0 : index
    %c0_56 = arith.constant 0 : index
    %101 = vector.load %arg4[%c2_54, %c0_55, %c0_56] : memref<8x49x32xf32, #tpu.memory_space<vmem>>, vector<1x49x32xf32>
    %102 = vector.shape_cast %101 : vector<1x49x32xf32> to vector<49x32xf32>
    %c3 = arith.constant 3 : index
    %c0_57 = arith.constant 0 : index
    %c0_58 = arith.constant 0 : index
    %103 = vector.load %arg4[%c3, %c0_57, %c0_58] : memref<8x49x32xf32, #tpu.memory_space<vmem>>, vector<1x49x32xf32>
    %104 = vector.shape_cast %103 : vector<1x49x32xf32> to vector<49x32xf32>
    %105 = tpu.concatenate %98, %100, %102, %104 in 1 : vector<49x32xf32>, vector<49x32xf32>, vector<49x32xf32>, vector<49x32xf32> -> vector<49x128xf32>
    %c0_59 = arith.constant 0 : index
    %c896 = arith.constant 896 : index
    %106 = vector.load %arg5[%c0_59, %c896] : memref<1x1184xf32, #tpu.memory_space<vmem>>, vector<1x128xf32>
    %c0_60 = arith.constant 0 : index
    %c896_61 = arith.constant 896 : index
    %107 = vector.load %arg6[%c0_60, %c896_61] : memref<1x1184xf32, #tpu.memory_space<vmem>>, vector<1x128xf32>
    %cst_62 = arith.constant dense<0.000000e+00> : vector<128xf32>
    %108 = vector.multi_reduction <add>, %105, %cst_62 [0] : vector<49x128xf32> to vector<128xf32>
    %109 = vector.shape_cast %108 : vector<128xf32> to vector<1x128xf32>
    %110 = arith.mulf %105, %105 : vector<49x128xf32>
    %cst_63 = arith.constant dense<0.000000e+00> : vector<128xf32>
    %111 = vector.multi_reduction <add>, %110, %cst_63 [0] : vector<49x128xf32> to vector<128xf32>
    %112 = vector.shape_cast %111 : vector<128xf32> to vector<1x128xf32>
    %cst_64 = arith.constant 0.0204081628 : f32
    %113 = vector.broadcast %cst_64 : f32 to vector<1x128xf32>
    %114 = arith.mulf %109, %113 : vector<1x128xf32>
    %cst_65 = arith.constant 0.0204081628 : f32
    %115 = vector.broadcast %cst_65 : f32 to vector<1x128xf32>
    %116 = arith.mulf %112, %115 : vector<1x128xf32>
    %117 = arith.mulf %114, %114 : vector<1x128xf32>
    %118 = arith.subf %116, %117 : vector<1x128xf32>
    %cst_66 = arith.constant 9.99999974E-6 : f32
    %119 = vector.broadcast %cst_66 : f32 to vector<1x128xf32>
    %120 = arith.addf %118, %119 : vector<1x128xf32>
    %121 = math.rsqrt %120 : vector<1x128xf32>
    %122 = arith.mulf %106, %121 : vector<1x128xf32>
    %123 = arith.mulf %114, %122 : vector<1x128xf32>
    %124 = arith.subf %107, %123 : vector<1x128xf32>
    %125 = vector.broadcast %122 : vector<1x128xf32> to vector<49x128xf32>
    %126 = arith.mulf %105, %125 : vector<49x128xf32>
    %127 = vector.broadcast %124 : vector<1x128xf32> to vector<49x128xf32>
    %128 = arith.addf %126, %127 : vector<49x128xf32>
    %c0_67 = arith.constant 0 : index
    %c896_68 = arith.constant 896 : index
    %129 = vector.load %arg7[%c0_67, %c896_68] : memref<49x1184xf32, #tpu.memory_space<vmem>>, vector<49x128xf32>
    tpu.vector_store %arg7[%c0_67, %c896_68], %128 {strides = array<i32>} : memref<49x1184xf32, #tpu.memory_space<vmem>>, vector<49x128xf32>,
    %c7_69 = arith.constant 7 : index
    %c0_70 = arith.constant 0 : index
    %c0_71 = arith.constant 0 : index
    %130 = vector.load %arg4[%c7_69, %c0_70, %c0_71] : memref<8x49x32xf32, #tpu.memory_space<vmem>>, vector<1x49x32xf32>
    %131 = vector.shape_cast %130 : vector<1x49x32xf32> to vector<49x32xf32>
    %c0_72 = arith.constant 0 : index
    %c1152 = arith.constant 1152 : index
    %132 = vector.load %arg5[%c0_72, %c1152] : memref<1x1184xf32, #tpu.memory_space<vmem>>, vector<1x32xf32>
    %c0_73 = arith.constant 0 : index
    %c1152_74 = arith.constant 1152 : index
    %133 = vector.load %arg6[%c0_73, %c1152_74] : memref<1x1184xf32, #tpu.memory_space<vmem>>, vector<1x32xf32>
    %cst_75 = arith.constant dense<0.000000e+00> : vector<32xf32>
    %134 = vector.multi_reduction <add>, %131, %cst_75 [0] : vector<49x32xf32> to vector<32xf32>
    %135 = vector.shape_cast %134 : vector<32xf32> to vector<1x32xf32>
    %136 = arith.mulf %131, %131 : vector<49x32xf32>
    %cst_76 = arith.constant dense<0.000000e+00> : vector<32xf32>
    %137 = vector.multi_reduction <add>, %136, %cst_76 [0] : vector<49x32xf32> to vector<32xf32>
    %138 = vector.shape_cast %137 : vector<32xf32> to vector<1x32xf32>
    %cst_77 = arith.constant 0.0204081628 : f32
    %139 = vector.broadcast %cst_77 : f32 to vector<1x32xf32>
    %140 = arith.mulf %135, %139 : vector<1x32xf32>
    %cst_78 = arith.constant 0.0204081628 : f32
    %141 = vector.broadcast %cst_78 : f32 to vector<1x32xf32>
    %142 = arith.mulf %138, %141 : vector<1x32xf32>
    %143 = arith.mulf %140, %140 : vector<1x32xf32>
    %144 = arith.subf %142, %143 : vector<1x32xf32>
    %cst_79 = arith.constant 9.99999974E-6 : f32
    %145 = vector.broadcast %cst_79 : f32 to vector<1x32xf32>
    %146 = arith.addf %144, %145 : vector<1x32xf32>
    %147 = math.rsqrt %146 : vector<1x32xf32>
    %148 = arith.mulf %132, %147 : vector<1x32xf32>
    %149 = arith.mulf %140, %148 : vector<1x32xf32>
    %150 = arith.subf %133, %149 : vector<1x32xf32>
    %151 = vector.broadcast %148 : vector<1x32xf32> to vector<49x32xf32>
    %152 = arith.mulf %131, %151 : vector<49x32xf32>
    %153 = vector.broadcast %150 : vector<1x32xf32> to vector<49x32xf32>
    %154 = arith.addf %152, %153 : vector<49x32xf32>
    %c0_80 = arith.constant 0 : index
    %c1152_81 = arith.constant 1152 : index
    %155 = vector.load %arg7[%c0_80, %c1152_81] : memref<49x1184xf32, #tpu.memory_space<vmem>>, vector<49x32xf32>
    tpu.vector_store %arg7[%c0_80, %c1152_81], %154 {strides = array<i32>} : memref<49x1184xf32, #tpu.memory_space<vmem>>, vector<49x32xf32>,
    %c0_82 = arith.constant 0 : index
    %c0_83 = arith.constant 0 : index
    %156 = vector.load %arg3[%c0_82, %c0_83] : memref<49x896xf32, #tpu.memory_space<vmem>>, vector<49x128xf32>
    %c0_84 = arith.constant 0 : index
    %c0_85 = arith.constant 0 : index
    %157 = vector.load %arg5[%c0_84, %c0_85] : memref<1x1184xf32, #tpu.memory_space<vmem>>, vector<1x128xf32>
    %c0_86 = arith.constant 0 : index
    %c0_87 = arith.constant 0 : index
    %158 = vector.load %arg6[%c0_86, %c0_87] : memref<1x1184xf32, #tpu.memory_space<vmem>>, vector<1x128xf32>
    %cst_88 = arith.constant dense<0.000000e+00> : vector<128xf32>
    %159 = vector.multi_reduction <add>, %156, %cst_88 [0] : vector<49x128xf32> to vector<128xf32>
    %160 = vector.shape_cast %159 : vector<128xf32> to vector<1x128xf32>
    %161 = arith.mulf %156, %156 : vector<49x128xf32>
    %cst_89 = arith.constant dense<0.000000e+00> : vector<128xf32>
    %162 = vector.multi_reduction <add>, %161, %cst_89 [0] : vector<49x128xf32> to vector<128xf32>
    %163 = vector.shape_cast %162 : vector<128xf32> to vector<1x128xf32>
    %cst_90 = arith.constant 0.0204081628 : f32
    %164 = vector.broadcast %cst_90 : f32 to vector<1x128xf32>
    %165 = arith.mulf %160, %164 : vector<1x128xf32>
    %cst_91 = arith.constant 0.0204081628 : f32
    %166 = vector.broadcast %cst_91 : f32 to vector<1x128xf32>
    %167 = arith.mulf %163, %166 : vector<1x128xf32>
    %168 = arith.mulf %165, %165 : vector<1x128xf32>
    %169 = arith.subf %167, %168 : vector<1x128xf32>
    %cst_92 = arith.constant 9.99999974E-6 : f32
    %170 = vector.broadcast %cst_92 : f32 to vector<1x128xf32>
    %171 = arith.addf %169, %170 : vector<1x128xf32>
    %172 = math.rsqrt %171 : vector<1x128xf32>
    %173 = arith.mulf %157, %172 : vector<1x128xf32>
    %174 = arith.mulf %165, %173 : vector<1x128xf32>
    %175 = arith.subf %158, %174 : vector<1x128xf32>
    %176 = vector.broadcast %173 : vector<1x128xf32> to vector<49x128xf32>
    %177 = arith.mulf %156, %176 : vector<49x128xf32>
    %178 = vector.broadcast %175 : vector<1x128xf32> to vector<49x128xf32>
    %179 = arith.addf %177, %178 : vector<49x128xf32>
    %c0_93 = arith.constant 0 : index
    %c0_94 = arith.constant 0 : index
    %180 = vector.load %arg7[%c0_93, %c0_94] : memref<49x1184xf32, #tpu.memory_space<vmem>>, vector<49x128xf32>
    tpu.vector_store %arg7[%c0_93, %c0_94], %179 {strides = array<i32>} : memref<49x1184xf32, #tpu.memory_space<vmem>>, vector<49x128xf32>,
    %c0_95 = arith.constant 0 : index
    %c128 = arith.constant 128 : index
    %181 = vector.load %arg3[%c0_95, %c128] : memref<49x896xf32, #tpu.memory_space<vmem>>, vector<49x128xf32>
    %c0_96 = arith.constant 0 : index
    %c128_97 = arith.constant 128 : index
    %182 = vector.load %arg5[%c0_96, %c128_97] : memref<1x1184xf32, #tpu.memory_space<vmem>>, vector<1x128xf32>
    %c0_98 = arith.constant 0 : index
    %c128_99 = arith.constant 128 : index
    %183 = vector.load %arg6[%c0_98, %c128_99] : memref<1x1184xf32, #tpu.memory_space<vmem>>, vector<1x128xf32>
    %cst_100 = arith.constant dense<0.000000e+00> : vector<128xf32>
    %184 = vector.multi_reduction <add>, %181, %cst_100 [0] : vector<49x128xf32> to vector<128xf32>
    %185 = vector.shape_cast %184 : vector<128xf32> to vector<1x128xf32>
    %186 = arith.mulf %181, %181 : vector<49x128xf32>
    %cst_101 = arith.constant dense<0.000000e+00> : vector<128xf32>
    %187 = vector.multi_reduction <add>, %186, %cst_101 [0] : vector<49x128xf32> to vector<128xf32>
    %188 = vector.shape_cast %187 : vector<128xf32> to vector<1x128xf32>
    %cst_102 = arith.constant 0.0204081628 : f32
    %189 = vector.broadcast %cst_102 : f32 to vector<1x128xf32>
    %190 = arith.mulf %185, %189 : vector<1x128xf32>
    %cst_103 = arith.constant 0.0204081628 : f32
    %191 = vector.broadcast %cst_103 : f32 to vector<1x128xf32>
    %192 = arith.mulf %188, %191 : vector<1x128xf32>
    %193 = arith.mulf %190, %190 : vector<1x128xf32>
    %194 = arith.subf %192, %193 : vector<1x128xf32>
    %cst_104 = arith.constant 9.99999974E-6 : f32
    %195 = vector.broadcast %cst_104 : f32 to vector<1x128xf32>
    %196 = arith.addf %194, %195 : vector<1x128xf32>
    %197 = math.rsqrt %196 : vector<1x128xf32>
    %198 = arith.mulf %182, %197 : vector<1x128xf32>
    %199 = arith.mulf %190, %198 : vector<1x128xf32>
    %200 = arith.subf %183, %199 : vector<1x128xf32>
    %201 = vector.broadcast %198 : vector<1x128xf32> to vector<49x128xf32>
    %202 = arith.mulf %181, %201 : vector<49x128xf32>
    %203 = vector.broadcast %200 : vector<1x128xf32> to vector<49x128xf32>
    %204 = arith.addf %202, %203 : vector<49x128xf32>
    %c0_105 = arith.constant 0 : index
    %c128_106 = arith.constant 128 : index
    %205 = vector.load %arg7[%c0_105, %c128_106] : memref<49x1184xf32, #tpu.memory_space<vmem>>, vector<49x128xf32>
    tpu.vector_store %arg7[%c0_105, %c128_106], %204 {strides = array<i32>} : memref<49x1184xf32, #tpu.memory_space<vmem>>, vector<49x128xf32>,
    %c0_107 = arith.constant 0 : index
    %c256 = arith.constant 256 : index
    %206 = vector.load %arg3[%c0_107, %c256] : memref<49x896xf32, #tpu.memory_space<vmem>>, vector<49x128xf32>
    %c0_108 = arith.constant 0 : index
    %c256_109 = arith.constant 256 : index
    %207 = vector.load %arg5[%c0_108, %c256_109] : memref<1x1184xf32, #tpu.memory_space<vmem>>, vector<1x128xf32>
    %c0_110 = arith.constant 0 : index
    %c256_111 = arith.constant 256 : index
    %208 = vector.load %arg6[%c0_110, %c256_111] : memref<1x1184xf32, #tpu.memory_space<vmem>>, vector<1x128xf32>
    %cst_112 = arith.constant dense<0.000000e+00> : vector<128xf32>
    %209 = vector.multi_reduction <add>, %206, %cst_112 [0] : vector<49x128xf32> to vector<128xf32>
    %210 = vector.shape_cast %209 : vector<128xf32> to vector<1x128xf32>
    %211 = arith.mulf %206, %206 : vector<49x128xf32>
    %cst_113 = arith.constant dense<0.000000e+00> : vector<128xf32>
    %212 = vector.multi_reduction <add>, %211, %cst_113 [0] : vector<49x128xf32> to vector<128xf32>
    %213 = vector.shape_cast %212 : vector<128xf32> to vector<1x128xf32>
    %cst_114 = arith.constant 0.0204081628 : f32
    %214 = vector.broadcast %cst_114 : f32 to vector<1x128xf32>
    %215 = arith.mulf %210, %214 : vector<1x128xf32>
    %cst_115 = arith.constant 0.0204081628 : f32
    %216 = vector.broadcast %cst_115 : f32 to vector<1x128xf32>
    %217 = arith.mulf %213, %216 : vector<1x128xf32>
    %218 = arith.mulf %215, %215 : vector<1x128xf32>
    %219 = arith.subf %217, %218 : vector<1x128xf32>
    %cst_116 = arith.constant 9.99999974E-6 : f32
    %220 = vector.broadcast %cst_116 : f32 to vector<1x128xf32>
    %221 = arith.addf %219, %220 : vector<1x128xf32>
    %222 = math.rsqrt %221 : vector<1x128xf32>
    %223 = arith.mulf %207, %222 : vector<1x128xf32>
    %224 = arith.mulf %215, %223 : vector<1x128xf32>
    %225 = arith.subf %208, %224 : vector<1x128xf32>
    %226 = vector.broadcast %223 : vector<1x128xf32> to vector<49x128xf32>
    %227 = arith.mulf %206, %226 : vector<49x128xf32>
    %228 = vector.broadcast %225 : vector<1x128xf32> to vector<49x128xf32>
    %229 = arith.addf %227, %228 : vector<49x128xf32>
    %c0_117 = arith.constant 0 : index
    %c256_118 = arith.constant 256 : index
    %230 = vector.load %arg7[%c0_117, %c256_118] : memref<49x1184xf32, #tpu.memory_space<vmem>>, vector<49x128xf32>
    tpu.vector_store %arg7[%c0_117, %c256_118], %229 {strides = array<i32>} : memref<49x1184xf32, #tpu.memory_space<vmem>>, vector<49x128xf32>,
    %c0_119 = arith.constant 0 : index
    %c384 = arith.constant 384 : index
    %231 = vector.load %arg3[%c0_119, %c384] : memref<49x896xf32, #tpu.memory_space<vmem>>, vector<49x128xf32>
    %c0_120 = arith.constant 0 : index
    %c384_121 = arith.constant 384 : index
    %232 = vector.load %arg5[%c0_120, %c384_121] : memref<1x1184xf32, #tpu.memory_space<vmem>>, vector<1x128xf32>
    %c0_122 = arith.constant 0 : index
    %c384_123 = arith.constant 384 : index
    %233 = vector.load %arg6[%c0_122, %c384_123] : memref<1x1184xf32, #tpu.memory_space<vmem>>, vector<1x128xf32>
    %cst_124 = arith.constant dense<0.000000e+00> : vector<128xf32>
    %234 = vector.multi_reduction <add>, %231, %cst_124 [0] : vector<49x128xf32> to vector<128xf32>
    %235 = vector.shape_cast %234 : vector<128xf32> to vector<1x128xf32>
    %236 = arith.mulf %231, %231 : vector<49x128xf32>
    %cst_125 = arith.constant dense<0.000000e+00> : vector<128xf32>
    %237 = vector.multi_reduction <add>, %236, %cst_125 [0] : vector<49x128xf32> to vector<128xf32>
    %238 = vector.shape_cast %237 : vector<128xf32> to vector<1x128xf32>
    %cst_126 = arith.constant 0.0204081628 : f32
    %239 = vector.broadcast %cst_126 : f32 to vector<1x128xf32>
    %240 = arith.mulf %235, %239 : vector<1x128xf32>
    %cst_127 = arith.constant 0.0204081628 : f32
    %241 = vector.broadcast %cst_127 : f32 to vector<1x128xf32>
    %242 = arith.mulf %238, %241 : vector<1x128xf32>
    %243 = arith.mulf %240, %240 : vector<1x128xf32>
    %244 = arith.subf %242, %243 : vector<1x128xf32>
    %cst_128 = arith.constant 9.99999974E-6 : f32
    %245 = vector.broadcast %cst_128 : f32 to vector<1x128xf32>
    %246 = arith.addf %244, %245 : vector<1x128xf32>
    %247 = math.rsqrt %246 : vector<1x128xf32>
    %248 = arith.mulf %232, %247 : vector<1x128xf32>
    %249 = arith.mulf %240, %248 : vector<1x128xf32>
    %250 = arith.subf %233, %249 : vector<1x128xf32>
    %251 = vector.broadcast %248 : vector<1x128xf32> to vector<49x128xf32>
    %252 = arith.mulf %231, %251 : vector<49x128xf32>
    %253 = vector.broadcast %250 : vector<1x128xf32> to vector<49x128xf32>
    %254 = arith.addf %252, %253 : vector<49x128xf32>
    %c0_129 = arith.constant 0 : index
    %c384_130 = arith.constant 384 : index
    %255 = vector.load %arg7[%c0_129, %c384_130] : memref<49x1184xf32, #tpu.memory_space<vmem>>, vector<49x128xf32>
    tpu.vector_store %arg7[%c0_129, %c384_130], %254 {strides = array<i32>} : memref<49x1184xf32, #tpu.memory_space<vmem>>, vector<49x128xf32>,
    %c0_131 = arith.constant 0 : index
    %c512 = arith.constant 512 : index
    %256 = vector.load %arg3[%c0_131, %c512] : memref<49x896xf32, #tpu.memory_space<vmem>>, vector<49x128xf32>
    %c0_132 = arith.constant 0 : index
    %c512_133 = arith.constant 512 : index
    %257 = vector.load %arg5[%c0_132, %c512_133] : memref<1x1184xf32, #tpu.memory_space<vmem>>, vector<1x128xf32>
    %c0_134 = arith.constant 0 : index
    %c512_135 = arith.constant 512 : index
    %258 = vector.load %arg6[%c0_134, %c512_135] : memref<1x1184xf32, #tpu.memory_space<vmem>>, vector<1x128xf32>
    %cst_136 = arith.constant dense<0.000000e+00> : vector<128xf32>
    %259 = vector.multi_reduction <add>, %256, %cst_136 [0] : vector<49x128xf32> to vector<128xf32>
    %260 = vector.shape_cast %259 : vector<128xf32> to vector<1x128xf32>
    %261 = arith.mulf %256, %256 : vector<49x128xf32>
    %cst_137 = arith.constant dense<0.000000e+00> : vector<128xf32>
    %262 = vector.multi_reduction <add>, %261, %cst_137 [0] : vector<49x128xf32> to vector<128xf32>
    %263 = vector.shape_cast %262 : vector<128xf32> to vector<1x128xf32>
    %cst_138 = arith.constant 0.0204081628 : f32
    %264 = vector.broadcast %cst_138 : f32 to vector<1x128xf32>
    %265 = arith.mulf %260, %264 : vector<1x128xf32>
    %cst_139 = arith.constant 0.0204081628 : f32
    %266 = vector.broadcast %cst_139 : f32 to vector<1x128xf32>
    %267 = arith.mulf %263, %266 : vector<1x128xf32>
    %268 = arith.mulf %265, %265 : vector<1x128xf32>
    %269 = arith.subf %267, %268 : vector<1x128xf32>
    %cst_140 = arith.constant 9.99999974E-6 : f32
    %270 = vector.broadcast %cst_140 : f32 to vector<1x128xf32>
    %271 = arith.addf %269, %270 : vector<1x128xf32>
    %272 = math.rsqrt %271 : vector<1x128xf32>
    %273 = arith.mulf %257, %272 : vector<1x128xf32>
    %274 = arith.mulf %265, %273 : vector<1x128xf32>
    %275 = arith.subf %258, %274 : vector<1x128xf32>
    %276 = vector.broadcast %273 : vector<1x128xf32> to vector<49x128xf32>
    %277 = arith.mulf %256, %276 : vector<49x128xf32>
    %278 = vector.broadcast %275 : vector<1x128xf32> to vector<49x128xf32>
    %279 = arith.addf %277, %278 : vector<49x128xf32>
    %c0_141 = arith.constant 0 : index
    %c512_142 = arith.constant 512 : index
    %280 = vector.load %arg7[%c0_141, %c512_142] : memref<49x1184xf32, #tpu.memory_space<vmem>>, vector<49x128xf32>
    tpu.vector_store %arg7[%c0_141, %c512_142], %279 {strides = array<i32>} : memref<49x1184xf32, #tpu.memory_space<vmem>>, vector<49x128xf32>,
    %c0_143 = arith.constant 0 : index
    %c640 = arith.constant 640 : index
    %281 = vector.load %arg3[%c0_143, %c640] : memref<49x896xf32, #tpu.memory_space<vmem>>, vector<49x128xf32>
    %c0_144 = arith.constant 0 : index
    %c640_145 = arith.constant 640 : index
    %282 = vector.load %arg5[%c0_144, %c640_145] : memref<1x1184xf32, #tpu.memory_space<vmem>>, vector<1x128xf32>
    %c0_146 = arith.constant 0 : index
    %c640_147 = arith.constant 640 : index
    %283 = vector.load %arg6[%c0_146, %c640_147] : memref<1x1184xf32, #tpu.memory_space<vmem>>, vector<1x128xf32>
    %cst_148 = arith.constant dense<0.000000e+00> : vector<128xf32>
    %284 = vector.multi_reduction <add>, %281, %cst_148 [0] : vector<49x128xf32> to vector<128xf32>
    %285 = vector.shape_cast %284 : vector<128xf32> to vector<1x128xf32>
    %286 = arith.mulf %281, %281 : vector<49x128xf32>
    %cst_149 = arith.constant dense<0.000000e+00> : vector<128xf32>
    %287 = vector.multi_reduction <add>, %286, %cst_149 [0] : vector<49x128xf32> to vector<128xf32>
    %288 = vector.shape_cast %287 : vector<128xf32> to vector<1x128xf32>
    %cst_150 = arith.constant 0.0204081628 : f32
    %289 = vector.broadcast %cst_150 : f32 to vector<1x128xf32>
    %290 = arith.mulf %285, %289 : vector<1x128xf32>
    %cst_151 = arith.constant 0.0204081628 : f32
    %291 = vector.broadcast %cst_151 : f32 to vector<1x128xf32>
    %292 = arith.mulf %288, %291 : vector<1x128xf32>
    %293 = arith.mulf %290, %290 : vector<1x128xf32>
    %294 = arith.subf %292, %293 : vector<1x128xf32>
    %cst_152 = arith.constant 9.99999974E-6 : f32
    %295 = vector.broadcast %cst_152 : f32 to vector<1x128xf32>
    %296 = arith.addf %294, %295 : vector<1x128xf32>
    %297 = math.rsqrt %296 : vector<1x128xf32>
    %298 = arith.mulf %282, %297 : vector<1x128xf32>
    %299 = arith.mulf %290, %298 : vector<1x128xf32>
    %300 = arith.subf %283, %299 : vector<1x128xf32>
    %301 = vector.broadcast %298 : vector<1x128xf32> to vector<49x128xf32>
    %302 = arith.mulf %281, %301 : vector<49x128xf32>
    %303 = vector.broadcast %300 : vector<1x128xf32> to vector<49x128xf32>
    %304 = arith.addf %302, %303 : vector<49x128xf32>
    %c0_153 = arith.constant 0 : index
    %c640_154 = arith.constant 640 : index
    %305 = vector.load %arg7[%c0_153, %c640_154] : memref<49x1184xf32, #tpu.memory_space<vmem>>, vector<49x128xf32>
    tpu.vector_store %arg7[%c0_153, %c640_154], %304 {strides = array<i32>} : memref<49x1184xf32, #tpu.memory_space<vmem>>, vector<49x128xf32>,
    %c0_155 = arith.constant 0 : index
    %c768 = arith.constant 768 : index
    %306 = vector.load %arg3[%c0_155, %c768] : memref<49x896xf32, #tpu.memory_space<vmem>>, vector<49x128xf32>
    %c0_156 = arith.constant 0 : index
    %c768_157 = arith.constant 768 : index
    %307 = vector.load %arg5[%c0_156, %c768_157] : memref<1x1184xf32, #tpu.memory_space<vmem>>, vector<1x128xf32>
    %c0_158 = arith.constant 0 : index
    %c768_159 = arith.constant 768 : index
    %308 = vector.load %arg6[%c0_158, %c768_159] : memref<1x1184xf32, #tpu.memory_space<vmem>>, vector<1x128xf32>
    %cst_160 = arith.constant dense<0.000000e+00> : vector<128xf32>
    %309 = vector.multi_reduction <add>, %306, %cst_160 [0] : vector<49x128xf32> to vector<128xf32>
    %310 = vector.shape_cast %309 : vector<128xf32> to vector<1x128xf32>
    %311 = arith.mulf %306, %306 : vector<49x128xf32>
    %cst_161 = arith.constant dense<0.000000e+00> : vector<128xf32>
    %312 = vector.multi_reduction <add>, %311, %cst_161 [0] : vector<49x128xf32> to vector<128xf32>
    %313 = vector.shape_cast %312 : vector<128xf32> to vector<1x128xf32>
    %cst_162 = arith.constant 0.0204081628 : f32
    %314 = vector.broadcast %cst_162 : f32 to vector<1x128xf32>
    %315 = arith.mulf %310, %314 : vector<1x128xf32>
    %cst_163 = arith.constant 0.0204081628 : f32
    %316 = vector.broadcast %cst_163 : f32 to vector<1x128xf32>
    %317 = arith.mulf %313, %316 : vector<1x128xf32>
    %318 = arith.mulf %315, %315 : vector<1x128xf32>
    %319 = arith.subf %317, %318 : vector<1x128xf32>
    %cst_164 = arith.constant 9.99999974E-6 : f32
    %320 = vector.broadcast %cst_164 : f32 to vector<1x128xf32>
    %321 = arith.addf %319, %320 : vector<1x128xf32>
    %322 = math.rsqrt %321 : vector<1x128xf32>
    %323 = arith.mulf %307, %322 : vector<1x128xf32>
    %324 = arith.mulf %315, %323 : vector<1x128xf32>
    %325 = arith.subf %308, %324 : vector<1x128xf32>
    %326 = vector.broadcast %323 : vector<1x128xf32> to vector<49x128xf32>
    %327 = arith.mulf %306, %326 : vector<49x128xf32>
    %328 = vector.broadcast %325 : vector<1x128xf32> to vector<49x128xf32>
    %329 = arith.addf %327, %328 : vector<49x128xf32>
    %c0_165 = arith.constant 0 : index
    %c768_166 = arith.constant 768 : index
    %330 = vector.load %arg7[%c0_165, %c768_166] : memref<49x1184xf32, #tpu.memory_space<vmem>>, vector<49x128xf32>
    tpu.vector_store %arg7[%c0_165, %c768_166], %329 {strides = array<i32>} : memref<49x1184xf32, #tpu.memory_space<vmem>>, vector<49x128xf32>,
    return
  }
  func.func @transform_0(%arg0: i32) -> (i32, i32) {
    %c0_i32 = arith.constant 0 : i32
    %c0_i32_0 = arith.constant 0 : i32
    %c0_i32_1 = arith.constant 0 : i32
    return %c0_i32, %c0_i32_0 : i32, i32
  }
  func.func @transform_1(%arg0: i32) -> (i32, i32, i32) {
    %c0_i32 = arith.constant 0 : i32
    %c0_i32_0 = arith.constant 0 : i32
    %c0_i32_1 = arith.constant 0 : i32
    %c0_i32_2 = arith.constant 0 : i32
    return %c0_i32, %c0_i32_0, %c0_i32_1 : i32, i32, i32
  }
  func.func @transform_2(%arg0: i32) -> (i32, i32) {
    %c0_i32 = arith.constant 0 : i32
    %c0_i32_0 = arith.constant 0 : i32
    %c0_i32_1 = arith.constant 0 : i32
    return %c0_i32, %c0_i32_0 : i32, i32
  }
  func.func @transform_3(%arg0: i32) -> (i32, i32, i32) {
    %c0_i32 = arith.constant 0 : i32
    %c0_i32_0 = arith.constant 0 : i32
    %c0_i32_1 = arith.constant 0 : i32
    %c0_i32_2 = arith.constant 0 : i32
    return %c0_i32, %c0_i32_0, %c0_i32_1 : i32, i32, i32
  }
  func.func @transform_4(%arg0: i32) -> (i32, i32) {
    %c0_i32 = arith.constant 0 : i32
    %c0_i32_0 = arith.constant 0 : i32
    %c0_i32_1 = arith.constant 0 : i32
    return %c0_i32, %c0_i32_0 : i32, i32
  }
  func.func @transform_5(%arg0: i32) -> (i32, i32) {
    %c0_i32 = arith.constant 0 : i32
    %c0_i32_0 = arith.constant 0 : i32
    %c0_i32_1 = arith.constant 0 : i32
    return %c0_i32, %c0_i32_0 : i32, i32
  }
  func.func @transform_6(%arg0: i32) -> (i32, i32) {
    %c0_i32 = arith.constant 0 : i32
    %c0_i32_0 = arith.constant 0 : i32
    %c0_i32_1 = arith.constant 0 : i32
    return %c0_i32, %c0_i32_0 : i32, i32
  }
}

</mosaic_0001>

<llo_original>
// kernel: module_forward.1
$region0: #{module_forward.1}
  #allocation0 [shape = 'u32[]', space=smem, size = 0x4, offset = 0x4, fixed_abs, tag = 'smem constant byte address 0x4 - core index']
  #allocation1 [shape = 'u32[144,128]{1,0:T(1,128)}', space=vmem, size = 0x12000, scoped, tag = 'internal scratch']
  #allocation2 [shape = 'f32[72,128]{1,0:T(8,128)}', space=vmem, size = 0x9000, scoped, tag = 'scratch operand']
  %s0 = inlined_call_operand.vmem [shape: f32[49,128], index: 0, kind: input, shape index: {}]
  %s1 = inlined_call_operand.vmem [shape: f32[3,384,32], index: 1, kind: input, shape index: {}]
  %s2 = inlined_call_operand.vmem [shape: f32[49,896], index: 2, kind: input, shape index: {}]
  %s3 = inlined_call_operand.vmem [shape: f32[8,49,32], index: 3, kind: input, shape index: {}]
  %s4 = inlined_call_operand.vmem [shape: f32[1,1184], index: 4, kind: input, shape index: {}]
  %s5 = inlined_call_operand.vmem [shape: f32[1,1184], index: 5, kind: input, shape index: {}]
  %s6 = inlined_call_operand.vmem [shape: f32[49,1184], index: 6, kind: output, shape index: {}]
  %s7 = sld [smem:[#allocation0]]
  $region34: #{module_forward.1} parent=0
    _
  %s9 = ssub.s32 1, %s7
  %s10 = scalar_select 0, %s9, %s7
  // Predicated region
  $region2: #{module_forward.1} parent=0 // pred_check
    _
  $region3: #{module_forward.1} parent=0 // pred_check_branch
    %12 = sbr.rel (0) target = $region5
  $region4: #{module_forward.1} parent=0 // pred_region
    _
  $region5: #{module_forward.1} parent=0 // pred_fallthru
    _
  // Predicated region
  $region6: #{module_forward.1} parent=0 // pred_check
    _
  $region7: #{module_forward.1} parent=0 // pred_check_branch
    %14 = sbr.rel (0) target = $region9
  $region8: #{module_forward.1} parent=0 // pred_region
    _
  $region9: #{module_forward.1} parent=0 // pred_fallthru
    _
  // Predicated region
  $region10: #{module_forward.1} parent=0 // pred_check
    _
  $region11: #{module_forward.1} parent=0 // pred_check_branch
    %16 = sbr.rel (0) target = $region13
  $region12: #{module_forward.1} parent=0 // pred_region
    _
  $region13: #{module_forward.1} parent=0 // pred_fallthru
    _
  // Predicated region
  $region14: #{module_forward.1} parent=0 // pred_check
    _
  $region15: #{module_forward.1} parent=0 // pred_check_branch
    %18 = sbr.rel (0) target = $region17
  $region16: #{module_forward.1} parent=0 // pred_region
    _
  $region17: #{module_forward.1} parent=0 // pred_fallthru
    _
  // Predicated region
  $region18: #{module_forward.1} parent=0 // pred_check
    _
  $region19: #{module_forward.1} parent=0 // pred_check_branch
    %20 = sbr.rel (0) target = $region21
  $region20: #{module_forward.1} parent=0 // pred_region
    _
  $region21: #{module_forward.1} parent=0 // pred_fallthru
    _
  // Predicated region
  $region22: #{module_forward.1} parent=0 // pred_check
    _
  $region23: #{module_forward.1} parent=0 // pred_check_branch
    %22 = sbr.rel (0) target = $region25
  $region24: #{module_forward.1} parent=0 // pred_region
    _
  $region25: #{module_forward.1} parent=0 // pred_fallthru
    _
  %23 = vst [vmem:[#allocation2] sm:$0xff] 0.0
  %24 = vst [vmem:[#allocation2 + $0x8] sm:$0xff] 0.0
  %25 = vst [vmem:[#allocation2 + $0x10] sm:$0xff] 0.0
  %26 = vst [vmem:[#allocation2 + $0x18] sm:$0xff] 0.0
  %27 = vst [vmem:[#allocation2 + $0x20] sm:$0xff] 0.0
  %28 = vst [vmem:[#allocation2 + $0x28] sm:$0xff] 0.0
  %29 = vst [vmem:[#allocation2 + $0x30] sm:$0xff] 0.0
  %30 = vst [vmem:[#allocation2 + $0x38] sm:$0xff] 0.0
  %31 = vst [vmem:[#allocation2 + $0x40] sm:$0xff] 0.0
  %v32 = vld [vmem:[%s0] sm:$0xff]
  %v33 = vld [vmem:[%s0 + $0x8] sm:$0xff]
  %v34 = vld [vmem:[%s0 + $0x10] sm:$0xff]
  %v35 = vld [vmem:[%s0 + $0x18] sm:$0xff]
  %v36 = vld [vmem:[%s0 + $0x20] sm:$0xff]
  %v37 = vld [vmem:[%s0 + $0x28] sm:$0xff]
  %v38 = vld [vmem:[%s0 + $0x30] sm:$0x1]
  %39 = vst [vmem:[#allocation2 + $0x8] sm:$0xff] %v32
  %40 = vst [vmem:[#allocation2 + $0x10] sm:$0xff] %v33
  %41 = vst [vmem:[#allocation2 + $0x18] sm:$0xff] %v34
  %42 = vst [vmem:[#allocation2 + $0x20] sm:$0xff] %v35
  %43 = vst [vmem:[#allocation2 + $0x28] sm:$0xff] %v36
  %44 = vst [vmem:[#allocation2 + $0x30] sm:$0xff] %v37
  %45 = vst [vmem:[#allocation2 + $0x38] sm:$0x1] %v38
  %v46 = vlaneseq
  %v47 = vshrl.u32 %v46, 7
  %v48 = vadd.s32 %v47, 8
  %v49 = vadd.s32 %v47, 16
  %v50 = vadd.s32 %v47, 24
  %v51 = vadd.s32 %v47, 32
  %v52 = vadd.s32 %v47, 40
  %v53 = vadd.s32 %v47, 48
  %vm54 = vcmp.lt.s32.totalorder %v47, 0
  %v55 = vsub.s32 0, %v47
  %v56 = vsel %vm54, %v55, %v47
  %v57 = vmul.u32.u64.compose %v56, 2454267026
  %v58 = vextract.low.u32 %v57
  %v59 = vextract.high.u32 %v57
  %vm60 = vc.u32 %v58, 2454267026
  %v61 = vsel %vm60, 1, 0
  %v62 = vadd.s32 %v59, %v61
  %v63 = vshrl.u32 %v62, 2
  %v64 = vmul.u32 %v63, 7
  %v65 = vsub.s32 %v56, %v64
  %v66 = vsub.s32 0, %v65
  %v67 = vsel %vm54, %v66, %v65
  %vm68 = vcmp.lt.s32.totalorder %v48, 0
  %v69 = vsub.s32 0, %v48
  %v70 = vsel %vm68, %v69, %v48
  %v71 = vmul.u32.u64.compose %v70, 2454267026
  %v72 = vextract.low.u32 %v71
  %v73 = vextract.high.u32 %v71
  %vm74 = vc.u32 %v72, 2454267026
  %v75 = vsel %vm74, 1, 0
  %v76 = vadd.s32 %v73, %v75
  %v77 = vshrl.u32 %v76, 2
  %v78 = vmul.u32 %v77, 7
  %v79 = vsub.s32 %v70, %v78
  %v80 = vsub.s32 0, %v79
  %v81 = vsel %vm68, %v80, %v79
  %vm82 = vcmp.lt.s32.totalorder %v49, 0
  %v83 = vsub.s32 0, %v49
  %v84 = vsel %vm82, %v83, %v49
  %v85 = vmul.u32.u64.compose %v84, 2454267026
  %v86 = vextract.low.u32 %v85
  %v87 = vextract.high.u32 %v85
  %vm88 = vc.u32 %v86, 2454267026
  %v89 = vsel %vm88, 1, 0
  %v90 = vadd.s32 %v87, %v89
  %v91 = vshrl.u32 %v90, 2
  %v92 = vmul.u32 %v91, 7
  %v93 = vsub.s32 %v84, %v92
  %v94 = vsub.s32 0, %v93
  %v95 = vsel %vm82, %v94, %v93
  %vm96 = vcmp.lt.s32.totalorder %v50, 0
  %v97 = vsub.s32 0, %v50
  %v98 = vsel %vm96, %v97, %v50
  %v99 = vmul.u32.u64.compose %v98, 2454267026
  %v100 = vextract.low.u32 %v99
  %v101 = vextract.high.u32 %v99
  %vm102 = vc.u32 %v100, 2454267026
  %v103 = vsel %vm102, 1, 0
  %v104 = vadd.s32 %v101, %v103
  %v105 = vshrl.u32 %v104, 2
  %v106 = vmul.u32 %v105, 7
  %v107 = vsub.s32 %v98, %v106
  %v108 = vsub.s32 0, %v107
  %v109 = vsel %vm96, %v108, %v107
  %vm110 = vcmp.lt.s32.totalorder %v51, 0
  %v111 = vsub.s32 0, %v51
  %v112 = vsel %vm110, %v111, %v51
  %v113 = vmul.u32.u64.compose %v112, 2454267026
  %v114 = vextract.low.u32 %v113
  %v115 = vextract.high.u32 %v113
  %vm116 = vc.u32 %v114, 2454267026
  %v117 = vsel %vm116, 1, 0
  %v118 = vadd.s32 %v115, %v117
  %v119 = vshrl.u32 %v118, 2
  %v120 = vmul.u32 %v119, 7
  %v121 = vsub.s32 %v112, %v120
  %v122 = vsub.s32 0, %v121
  %v123 = vsel %vm110, %v122, %v121
  %vm124 = vcmp.lt.s32.totalorder %v52, 0
  %v125 = vsub.s32 0, %v52
  %v126 = vsel %vm124, %v125, %v52
  %v127 = vmul.u32.u64.compose %v126, 2454267026
  %v128 = vextract.low.u32 %v127
  %v129 = vextract.high.u32 %v127
  %vm130 = vc.u32 %v128, 2454267026
  %v131 = vsel %vm130, 1, 0
  %v132 = vadd.s32 %v129, %v131
  %v133 = vshrl.u32 %v132, 2
  %v134 = vmul.u32 %v133, 7
  %v135 = vsub.s32 %v126, %v134
  %v136 = vsub.s32 0, %v135
  %v137 = vsel %vm124, %v136, %v135
  %vm138 = vcmp.lt.s32.totalorder %v53, 0
  %v139 = vsub.s32 0, %v53
  %v140 = vsel %vm138, %v139, %v53
  %v141 = vmul.u32.u64.compose %v140, 2454267026
  %v142 = vextract.low.u32 %v141
  %v143 = vextract.high.u32 %v141
  %vm144 = vc.u32 %v142, 2454267026
  %v145 = vsel %vm144, 1, 0
  %v146 = vadd.s32 %v143, %v145
  %v147 = vshrl.u32 %v146, 2
  %v148 = vmul.u32 %v147, 7
  %v149 = vsub.s32 %v140, %v148
  %v150 = vsub.s32 0, %v149
  %v151 = vsel %vm138, %v150, %v149
  %vm152 = vcmp.ne.s32.totalorder %v67, 0
  %vm153 = vcmp.ne.s32.totalorder %v81, 0
  %vm154 = vcmp.ne.s32.totalorder %v95, 0
  %vm155 = vcmp.ne.s32.totalorder %v109, 0
  %vm156 = vcmp.ne.s32.totalorder %v123, 0
  %vm157 = vcmp.ne.s32.totalorder %v137, 0
  %vm158 = vcmp.ne.s32.totalorder %v151, 0
  %vm159 = vcmp.lt.s32.totalorder %v67, 0
  %vm160 = vcmp.lt.s32.totalorder %v81, 0
  %vm161 = vcmp.lt.s32.totalorder %v95, 0
  %vm162 = vcmp.lt.s32.totalorder %v109, 0
  %vm163 = vcmp.lt.s32.totalorder %v123, 0
  %vm164 = vcmp.lt.s32.totalorder %v137, 0
  %vm165 = vcmp.lt.s32.totalorder %v151, 0
  %vm166 = vmand %vm159, %vm152
  %vm167 = vmand %vm160, %vm153
  %vm168 = vmand %vm161, %vm154
  %vm169 = vmand %vm162, %vm155
  %vm170 = vmand %vm163, %vm156
  %vm171 = vmand %vm164, %vm157
  %vm172 = vmand %vm165, %vm158
  %v173 = vadd.s32 %v67, 7
  %v174 = vadd.s32 %v81, 7
  %v175 = vadd.s32 %v95, 7
  %v176 = vadd.s32 %v109, 7
  %v177 = vadd.s32 %v123, 7
  %v178 = vadd.s32 %v137, 7
  %v179 = vadd.s32 %v151, 7
  %v180 = vsel %vm166, %v173, %v67
  %v181 = vsel %vm167, %v174, %v81
  %v182 = vsel %vm168, %v175, %v95
  %v183 = vsel %vm169, %v176, %v109
  %v184 = vsel %vm170, %v177, %v123
  %v185 = vsel %vm171, %v178, %v137
  %v186 = vsel %vm172, %v179, %v151
  %vm187 = vcmp.ne.s32.totalorder %v180, 0
  %vm188 = vcmp.ne.s32.totalorder %v181, 0
  %vm189 = vcmp.ne.s32.totalorder %v182, 0
  %vm190 = vcmp.ne.s32.totalorder %v183, 0
  %vm191 = vcmp.ne.s32.totalorder %v184, 0
  %vm192 = vcmp.ne.s32.totalorder %v185, 0
  %vm193 = vcmp.ne.s32.totalorder %v186, 0
  %v194 = vsel %vm187, 1, 0
  %v195 = vsel %vm188, 1, 0
  %v196 = vsel %vm189, 1, 0
  %v197 = vsel %vm190, 1, 0
  %v198 = vsel %vm191, 1, 0
  %v199 = vsel %vm192, 1, 0
  %v200 = vsel %vm193, 1, 0
  %v201 = vcvt.s32.f32 %v194
  %v202 = vcvt.s32.f32 %v195
  %v203 = vcvt.s32.f32 %v196
  %v204 = vcvt.s32.f32 %v197
  %v205 = vcvt.s32.f32 %v198
  %v206 = vcvt.s32.f32 %v199
  %v207 = vcvt.s32.f32 %v200
  %vm208 = vcmp.ne.s32.totalorder %v180, 6
  %vm209 = vcmp.ne.s32.totalorder %v181, 6
  %vm210 = vcmp.ne.s32.totalorder %v182, 6
  %vm211 = vcmp.ne.s32.totalorder %v183, 6
  %vm212 = vcmp.ne.s32.totalorder %v184, 6
  %vm213 = vcmp.ne.s32.totalorder %v185, 6
  %vm214 = vcmp.ne.s32.totalorder %v186, 6
  %v215 = vsel %vm208, 1, 0
  %v216 = vsel %vm209, 1, 0
  %v217 = vsel %vm210, 1, 0
  %v218 = vsel %vm211, 1, 0
  %v219 = vsel %vm212, 1, 0
  %v220 = vsel %vm213, 1, 0
  %v221 = vsel %vm214, 1, 0
  %v222 = vcvt.s32.f32 %v215
  %v223 = vcvt.s32.f32 %v216
  %v224 = vcvt.s32.f32 %v217
  %v225 = vcvt.s32.f32 %v218
  %v226 = vcvt.s32.f32 %v219
  %v227 = vcvt.s32.f32 %v220
  %v228 = vcvt.s32.f32 %v221
  %v229 = vld [vmem:[#allocation2] sm:$0xff]
  %v230 = vld [vmem:[#allocation2 + $0x8] sm:$0xff]
  %v231 = vld [vmem:[#allocation2 + $0x10] sm:$0xff]
  %v232 = vld [vmem:[#allocation2 + $0x18] sm:$0xff]
  %v233 = vld [vmem:[#allocation2 + $0x20] sm:$0xff]
  %v234 = vld [vmem:[#allocation2 + $0x28] sm:$0xff]
  %v235 = vld [vmem:[#allocation2 + $0x30] sm:$0x1]
  %v236 = vmul.f32 %v229, %v201
  %v237 = vmul.f32 %v230, %v202
  %v238 = vmul.f32 %v231, %v203
  %v239 = vmul.f32 %v232, %v204
  %v240 = vmul.f32 %v233, %v205
  %v241 = vmul.f32 %v234, %v206
  %v242 = vmul.f32 %v235, %v207
  %v243 = vld [vmem:[#allocation2 + $0x1] sm:$0xff]
  %v244 = vld [vmem:[#allocation2 + $0x9] sm:$0xff]
  %v245 = vld [vmem:[#allocation2 + $0x11] sm:$0xff]
  %v246 = vld [vmem:[#allocation2 + $0x19] sm:$0xff]
  %v247 = vld [vmem:[#allocation2 + $0x21] sm:$0xff]
  %v248 = vld [vmem:[#allocation2 + $0x29] sm:$0xff]
  %v249 = vld [vmem:[#allocation2 + $0x31] sm:$0x1]
  %v250 = vld [vmem:[#allocation2 + $0x2] sm:$0xff]
  %v251 = vld [vmem:[#allocation2 + $0xa] sm:$0xff]
  %v252 = vld [vmem:[#allocation2 + $0x12] sm:$0xff]
  %v253 = vld [vmem:[#allocation2 + $0x1a] sm:$0xff]
  %v254 = vld [vmem:[#allocation2 + $0x22] sm:$0xff]
  %v255 = vld [vmem:[#allocation2 + $0x2a] sm:$0xff]
  %v256 = vld [vmem:[#allocation2 + $0x32] sm:$0x1]
  %v257 = vmul.f32 %v250, %v222
  %v258 = vmul.f32 %v251, %v223
  %v259 = vmul.f32 %v252, %v224
  %v260 = vmul.f32 %v253, %v225
  %v261 = vmul.f32 %v254, %v226
  %v262 = vmul.f32 %v255, %v227
  %v263 = vmul.f32 %v256, %v228
  %v264 = vld [vmem:[%s1] sm:$0xff]
  %v265 = vld [vmem:[%s1 + $0x8] sm:$0xff]
  %v266 = vld [vmem:[%s1 + $0x10] sm:$0xff]
  %v267 = vld [vmem:[%s1 + $0x18] sm:$0xff]
  %v268 = vld [vmem:[%s1 + $0x20] sm:$0xff]
  %v269 = vld [vmem:[%s1 + $0x28] sm:$0xff]
  %v270 = vld [vmem:[%s1 + $0x30] sm:$0xff]
  %v271 = vld [vmem:[%s1 + $0x38] sm:$0xff]
  %v272 = vld [vmem:[%s1 + $0x40] sm:$0xff]
  %v273 = vld [vmem:[%s1 + $0x48] sm:$0xff]
  %v274 = vld [vmem:[%s1 + $0x50] sm:$0xff]
  %v275 = vld [vmem:[%s1 + $0x58] sm:$0xff]
  %v276 = vld [vmem:[%s1 + $0x60] sm:$0xff]
  %v277 = vld [vmem:[%s1 + $0x68] sm:$0xff]
  %v278 = vld [vmem:[%s1 + $0x70] sm:$0xff]
  %v279 = vld [vmem:[%s1 + $0x78] sm:$0xff]
  %v280 = vld [vmem:[%s1 + $0x80] sm:$0xff]
  %v281 = vld [vmem:[%s1 + $0x88] sm:$0xff]
  %v282 = vld [vmem:[%s1 + $0x90] sm:$0xff]
  %v283 = vld [vmem:[%s1 + $0x98] sm:$0xff]
  %v284 = vld [vmem:[%s1 + $0xa0] sm:$0xff]
  %v285 = vld [vmem:[%s1 + $0xa8] sm:$0xff]
  %v286 = vld [vmem:[%s1 + $0xb0] sm:$0xff]
  %v287 = vld [vmem:[%s1 + $0xb8] sm:$0xff]
  %v288 = vld [vmem:[%s1 + $0xc0] sm:$0xff]
  %v289 = vld [vmem:[%s1 + $0xc8] sm:$0xff]
  %v290 = vld [vmem:[%s1 + $0xd0] sm:$0xff]
  %v291 = vld [vmem:[%s1 + $0xd8] sm:$0xff]
  %v292 = vld [vmem:[%s1 + $0xe0] sm:$0xff]
  %v293 = vld [vmem:[%s1 + $0xe8] sm:$0xff]
  %v294 = vld [vmem:[%s1 + $0xf0] sm:$0xff]
  %v295 = vld [vmem:[%s1 + $0xf8] sm:$0xff]
  %v296 = vld [vmem:[%s1 + $0x100] sm:$0xff]
  %v297 = vld [vmem:[%s1 + $0x108] sm:$0xff]
  %v298 = vld [vmem:[%s1 + $0x110] sm:$0xff]
  %v299 = vld [vmem:[%s1 + $0x118] sm:$0xff]
  %v300 = vld [vmem:[%s1 + $0x120] sm:$0xff]
  %v301 = vld [vmem:[%s1 + $0x128] sm:$0xff]
  %v302 = vld [vmem:[%s1 + $0x130] sm:$0xff]
  %v303 = vld [vmem:[%s1 + $0x138] sm:$0xff]
  %v304 = vld [vmem:[%s1 + $0x140] sm:$0xff]
  %v305 = vld [vmem:[%s1 + $0x148] sm:$0xff]
  %v306 = vld [vmem:[%s1 + $0x150] sm:$0xff]
  %v307 = vld [vmem:[%s1 + $0x158] sm:$0xff]
  %v308 = vld [vmem:[%s1 + $0x160] sm:$0xff]
  %v309 = vld [vmem:[%s1 + $0x168] sm:$0xff]
  %v310 = vld [vmem:[%s1 + $0x170] sm:$0xff]
  %v311 = vld [vmem:[%s1 + $0x178] sm:$0xff]
  %v312 = vld [vmem:[#allocation2 + $0x7] sm:$0xff]
  %v313 = vld [vmem:[#allocation2 + $0xf] sm:$0xff]
  %v314 = vld [vmem:[#allocation2 + $0x17] sm:$0xff]
  %v315 = vld [vmem:[#allocation2 + $0x1f] sm:$0xff]
  %v316 = vld [vmem:[#allocation2 + $0x27] sm:$0xff]
  %v317 = vld [vmem:[#allocation2 + $0x2f] sm:$0xff]
  %v318 = vld [vmem:[#allocation2 + $0x37] sm:$0x1]
  %v319 = vmul.f32 %v312, %v201
  %v320 = vmul.f32 %v313, %v202
  %v321 = vmul.f32 %v314, %v203
  %v322 = vmul.f32 %v315, %v204
  %v323 = vmul.f32 %v316, %v205
  %v324 = vmul.f32 %v317, %v206
  %v325 = vmul.f32 %v318, %v207
  %v326 = vld [vmem:[#allocation2 + $0x30] sm:$0xff]
  %v327 = vld [vmem:[#allocation2 + $0x38] sm:$0x1]
  %v328 = vld [vmem:[#allocation2 + $0x31] sm:$0xff]
  %v329 = vld [vmem:[#allocation2 + $0x39] sm:$0x1]
  %v330 = vmul.f32 %v244, %v222
  %v331 = vmul.f32 %v245, %v223
  %v332 = vmul.f32 %v246, %v224
  %v333 = vmul.f32 %v247, %v225
  %v334 = vmul.f32 %v248, %v226
  %v335 = vmul.f32 %v328, %v227
  %v336 = vmul.f32 %v329, %v228
  %s337 = scalar_lea.vmem %s1, 384
  %v338 = vld [vmem:[%s337] sm:$0xff]
  %v339 = vld [vmem:[%s337 + $0x8] sm:$0xff]
  %v340 = vld [vmem:[%s337 + $0x10] sm:$0xff]
  %v341 = vld [vmem:[%s337 + $0x18] sm:$0xff]
  %v342 = vld [vmem:[%s337 + $0x20] sm:$0xff]
  %v343 = vld [vmem:[%s337 + $0x28] sm:$0xff]
  %v344 = vld [vmem:[%s337 + $0x30] sm:$0xff]
  %v345 = vld [vmem:[%s337 + $0x38] sm:$0xff]
  %v346 = vld [vmem:[%s337 + $0x40] sm:$0xff]
  %v347 = vld [vmem:[%s337 + $0x48] sm:$0xff]
  %v348 = vld [vmem:[%s337 + $0x50] sm:$0xff]
  %v349 = vld [vmem:[%s337 + $0x58] sm:$0xff]
  %v350 = vld [vmem:[%s337 + $0x60] sm:$0xff]
  %v351 = vld [vmem:[%s337 + $0x68] sm:$0xff]
  %v352 = vld [vmem:[%s337 + $0x70] sm:$0xff]
  %v353 = vld [vmem:[%s337 + $0x78] sm:$0xff]
  %v354 = vld [vmem:[%s337 + $0x80] sm:$0xff]
  %v355 = vld [vmem:[%s337 + $0x88] sm:$0xff]
  %v356 = vld [vmem:[%s337 + $0x90] sm:$0xff]
  %v357 = vld [vmem:[%s337 + $0x98] sm:$0xff]
  %v358 = vld [vmem:[%s337 + $0xa0] sm:$0xff]
  %v359 = vld [vmem:[%s337 + $0xa8] sm:$0xff]
  %v360 = vld [vmem:[%s337 + $0xb0] sm:$0xff]
  %v361 = vld [vmem:[%s337 + $0xb8] sm:$0xff]
  %v362 = vld [vmem:[%s337 + $0xc0] sm:$0xff]
  %v363 = vld [vmem:[%s337 + $0xc8] sm:$0xff]
  %v364 = vld [vmem:[%s337 + $0xd0] sm:$0xff]
  %v365 = vld [vmem:[%s337 + $0xd8] sm:$0xff]
  %v366 = vld [vmem:[%s337 + $0xe0] sm:$0xff]
  %v367 = vld [vmem:[%s337 + $0xe8] sm:$0xff]
  %v368 = vld [vmem:[%s337 + $0xf0] sm:$0xff]
  %v369 = vld [vmem:[%s337 + $0xf8] sm:$0xff]
  %v370 = vld [vmem:[%s337 + $0x100] sm:$0xff]
  %v371 = vld [vmem:[%s337 + $0x108] sm:$0xff]
  %v372 = vld [vmem:[%s337 + $0x110] sm:$0xff]
  %v373 = vld [vmem:[%s337 + $0x118] sm:$0xff]
  %v374 = vld [vmem:[%s337 + $0x120] sm:$0xff]
  %v375 = vld [vmem:[%s337 + $0x128] sm:$0xff]
  %v376 = vld [vmem:[%s337 + $0x130] sm:$0xff]
  %v377 = vld [vmem:[%s337 + $0x138] sm:$0xff]
  %v378 = vld [vmem:[%s337 + $0x140] sm:$0xff]
  %v379 = vld [vmem:[%s337 + $0x148] sm:$0xff]
  %v380 = vld [vmem:[%s337 + $0x150] sm:$0xff]
  %v381 = vld [vmem:[%s337 + $0x158] sm:$0xff]
  %v382 = vld [vmem:[%s337 + $0x160] sm:$0xff]
  %v383 = vld [vmem:[%s337 + $0x168] sm:$0xff]
  %v384 = vld [vmem:[%s337 + $0x170] sm:$0xff]
  %v385 = vld [vmem:[%s337 + $0x178] sm:$0xff]
  %386 = vmatprep.subr.mxu0 0.0
  %387 = vmatpush1.msra.mxu0 %v338
  %388 = vmatprep.subr.mxu0 0.0
  %389 = vmatpush1.msra.mxu0 %v339
  %390 = vmatprep.subr.mxu0 0.0
  %391 = vmatpush1.msra.mxu0 %v340
  %392 = vmatprep.subr.mxu0 0.0
  %393 = vmatpush1.msra.mxu0 %v341
  %394 = vmatprep.subr.mxu0 0.0
  %395 = vmatpush1.msra.mxu0 %v342
  %396 = vmatprep.subr.mxu0 0.0
  %397 = vmatpush1.msra.mxu0 %v343
  %398 = vmatprep.subr.mxu0 0.0
  %399 = vmatpush1.msra.mxu0 %v344
  %400 = vmatprep.subr.mxu0 0.0
  %401 = vmatpush1.msra.mxu0 %v345
  %402 = vmatprep.subr.mxu0 0.0
  %403 = vmatpush1.msra.mxu0 %v346
  %404 = vmatprep.subr.mxu0 0.0
  %405 = vmatpush1.msra.mxu0 %v347
  %406 = vmatprep.subr.mxu0 0.0
  %407 = vmatpush1.msra.mxu0 %v348
  %408 = vmatprep.subr.mxu0 0.0
  %409 = vmatpush1.msra.mxu0 %v349
  %410 = vmatprep.subr.mxu0 0.0
  %411 = vmatpush1.msra.mxu0 %v350
  %412 = vmatprep.subr.mxu0 0.0
  %413 = vmatpush1.msra.mxu0 %v351
  %414 = vmatprep.subr.mxu0 0.0
  %415 = vmatpush1.msra.mxu0 %v352
  %416 = vmatprep.subr.mxu0 0.0
  %417 = vmatpush1.msra.mxu0 %v353
  %418 = vmatprep.subr.mxu0 0.0
  %419 = vmatpush1.msra.mxu0 %v354
  %420 = vmatprep.subr.mxu0 0.0
  %421 = vmatpush1.msra.mxu0 %v355
  %422 = vmatprep.subr.mxu0 0.0
  %423 = vmatpush1.msra.mxu0 %v356
  %424 = vmatprep.subr.mxu0 0.0
  %425 = vmatpush1.msra.mxu0 %v357
  %426 = vmatprep.subr.mxu0 0.0
  %427 = vmatpush1.msra.mxu0 %v358
  %428 = vmatprep.subr.mxu0 0.0
  %429 = vmatpush1.msra.mxu0 %v359
  %430 = vmatprep.subr.mxu0 0.0
  %431 = vmatpush1.msra.mxu0 %v360
  %432 = vmatprep.subr.mxu0 0.0
  %433 = vmatpush1.msra.mxu0 %v361
  %434 = vmatprep.subr.mxu0 0.0
  %435 = vmatpush1.msra.mxu0 %v362
  %436 = vmatprep.subr.mxu0 0.0
  %437 = vmatpush1.msra.mxu0 %v363
  %438 = vmatprep.subr.mxu0 0.0
  %439 = vmatpush1.msra.mxu0 %v364
  %440 = vmatprep.subr.mxu0 0.0
  %441 = vmatpush1.msra.mxu0 %v365
  %442 = vmatprep.subr.mxu0 0.0
  %443 = vmatpush1.msra.mxu0 %v366
  %444 = vmatprep.subr.mxu0 0.0
  %445 = vmatpush1.msra.mxu0 %v367
  %446 = vmatprep.subr.mxu0 0.0
  %447 = vmatpush1.msra.mxu0 %v368
  %448 = vmatprep.subr.mxu0 0.0
  %449 = vmatpush1.msra.mxu0 %v369
  %450 = vmatprep.mubr.f32.mxu0 %v230
  %451 = vmatmul.mubr.f32.gmra.mrb[0].mxu0 %v319
  %v452 = vpop.f32.mrb[0].mxu0
  %v453 = vadd.f32 0.0, %v452
  %v454 = vpop.f32.mrb[0].mxu0
  %455 = vmatprep.mubr.f32.mxu0 %v231
  %456 = vmatmul.mubr.f32.gmra.mrb[0].mxu0 %v320
  %v457 = vpop.f32.mrb[0].mxu0
  %v458 = vadd.f32 0.0, %v457
  %v459 = vpop.f32.mrb[0].mxu0
  %460 = vmatprep.mubr.f32.mxu0 %v232
  %461 = vmatmul.mubr.f32.gmra.mrb[0].mxu0 %v321
  %v462 = vpop.f32.mrb[0].mxu0
  %v463 = vadd.f32 0.0, %v462
  %v464 = vpop.f32.mrb[0].mxu0
  %465 = vmatprep.mubr.f32.mxu0 %v233
  %466 = vmatmul.mubr.f32.gmra.mrb[0].mxu0 %v322
  %v467 = vpop.f32.mrb[0].mxu0
  %v468 = vadd.f32 0.0, %v467
  %v469 = vpop.f32.mrb[0].mxu0
  %470 = vmatprep.mubr.f32.mxu0 %v234
  %471 = vmatmul.mubr.f32.gmra.mrb[0].mxu0 %v323
  %v472 = vpop.f32.mrb[0].mxu0
  %v473 = vadd.f32 0.0, %v472
  %v474 = vpop.f32.mrb[0].mxu0
  %475 = vmatprep.mubr.f32.mxu0 %v326
  %476 = vmatmul.mubr.f32.gmra.mrb[0].mxu0 %v324
  %v477 = vpop.f32.mrb[0].mxu0
  %v478 = vadd.f32 0.0, %v477
  %v479 = vpop.f32.mrb[0].mxu0
  %480 = vmatprep.mubr.f32.mxu0 %v327
  %481 = vmatmul.mubr.f32.gmra.mrb[0].mxu0 %v325
  %v482 = vpop.f32.mrb[0].mxu0
  %v483 = vadd.f32 0.0, %v482
  %v484 = vpop.f32.mrb[0].mxu0
  %485 = vdwg.mxu0
  %486 = vmatprep.subr.mxu0 0.0
  %487 = vmatpush1.msra.mxu0 %v370
  %488 = vmatprep.subr.mxu0 0.0
  %489 = vmatpush1.msra.mxu0 %v371
  %490 = vmatprep.subr.mxu0 0.0
  %491 = vmatpush1.msra.mxu0 %v372
  %492 = vmatprep.subr.mxu0 0.0
  %493 = vmatpush1.msra.mxu0 %v373
  %494 = vmatprep.subr.mxu0 0.0
  %495 = vmatpush1.msra.mxu0 %v374
  %496 = vmatprep.subr.mxu0 0.0
  %497 = vmatpush1.msra.mxu0 %v375
  %498 = vmatprep.subr.mxu0 0.0
  %499 = vmatpush1.msra.mxu0 %v376
  %500 = vmatprep.subr.mxu0 0.0
  %501 = vmatpush1.msra.mxu0 %v377
  %502 = vmatprep.subr.mxu0 0.0
  %503 = vmatpush1.msra.mxu0 %v378
  %504 = vmatprep.subr.mxu0 0.0
  %505 = vmatpush1.msra.mxu0 %v379
  %506 = vmatprep.subr.mxu0 0.0
  %507 = vmatpush1.msra.mxu0 %v380
  %508 = vmatprep.subr.mxu0 0.0
  %509 = vmatpush1.msra.mxu0 %v381
  %510 = vmatprep.subr.mxu0 0.0
  %511 = vmatpush1.msra.mxu0 %v382
  %512 = vmatprep.subr.mxu0 0.0
  %513 = vmatpush1.msra.mxu0 %v383
  %514 = vmatprep.subr.mxu0 0.0
  %515 = vmatpush1.msra.mxu0 %v384
  %516 = vmatprep.subr.mxu0 0.0
  %517 = vmatpush1.msra.mxu0 %v385
  %518 = vmatprep.subr.mxu0 0.0
  %519 = vmatpush1.msra.mxu0 0.0
  %520 = vmatprep.subr.mxu0 0.0
  %521 = vmatpush1.msra.mxu0 0.0
  %522 = vmatprep.subr.mxu0 0.0
  %523 = vmatpush1.msra.mxu0 0.0
  %524 = vmatprep.subr.mxu0 0.0
  %525 = vmatpush1.msra.mxu0 0.0
  %526 = vmatprep.subr.mxu0 0.0
  %527 = vmatpush1.msra.mxu0 0.0
  %528 = vmatprep.subr.mxu0 0.0
  %529 = vmatpush1.msra.mxu0 0.0
  %530 = vmatprep.subr.mxu0 0.0
  %531 = vmatpush1.msra.mxu0 0.0
  %532 = vmatprep.subr.mxu0 0.0
  %533 = vmatpush1.msra.mxu0 0.0
  %534 = vmatprep.subr.mxu0 0.0
  %535 = vmatpush1.msra.mxu0 0.0
  %536 = vmatprep.subr.mxu0 0.0
  %537 = vmatpush1.msra.mxu0 0.0
  %538 = vmatprep.subr.mxu0 0.0
  %539 = vmatpush1.msra.mxu0 0.0
  %540 = vmatprep.subr.mxu0 0.0
  %541 = vmatpush1.msra.mxu0 0.0
  %542 = vmatprep.subr.mxu0 0.0
  %543 = vmatpush1.msra.mxu0 0.0
  %544 = vmatprep.subr.mxu0 0.0
  %545 = vmatpush1.msra.mxu0 0.0
  %546 = vmatprep.subr.mxu0 0.0
  %547 = vmatpush1.msra.mxu0 0.0
  %548 = vmatprep.subr.mxu0 0.0
  %549 = vmatpush1.msra.mxu0 0.0
  %550 = vmatprep.mubr.f32.mxu0 0.0
  %551 = vmatmul.mubr.f32.gmra.mrb[0].mxu0 %v330
  %v552 = vpop.f32.mrb[0].mxu0
  %v553 = vadd.f32 %v453, %v552
  %v554 = vpop.f32.mrb[0].mxu0
  %555 = vmatprep.mubr.f32.mxu0 0.0
  %556 = vmatmul.mubr.f32.gmra.mrb[0].mxu0 %v331
  %v557 = vpop.f32.mrb[0].mxu0
  %v558 = vadd.f32 %v458, %v557
  %v559 = vpop.f32.mrb[0].mxu0
  %560 = vmatprep.mubr.f32.mxu0 0.0
  %561 = vmatmul.mubr.f32.gmra.mrb[0].mxu0 %v332
  %v562 = vpop.f32.mrb[0].mxu0
  %v563 = vadd.f32 %v463, %v562
  %v564 = vpop.f32.mrb[0].mxu0
  %565 = vmatprep.mubr.f32.mxu0 0.0
  %566 = vmatmul.mubr.f32.gmra.mrb[0].mxu0 %v333
  %v567 = vpop.f32.mrb[0].mxu0
  %v568 = vadd.f32 %v468, %v567
  %v569 = vpop.f32.mrb[0].mxu0
  %570 = vmatprep.mubr.f32.mxu0 0.0
  %571 = vmatmul.mubr.f32.gmra.mrb[0].mxu0 %v334
  %v572 = vpop.f32.mrb[0].mxu0
  %v573 = vadd.f32 %v473, %v572
  %v574 = vpop.f32.mrb[0].mxu0
  %575 = vmatprep.mubr.f32.mxu0 0.0
  %576 = vmatmul.mubr.f32.gmra.mrb[0].mxu0 %v335
  %v577 = vpop.f32.mrb[0].mxu0
  %v578 = vadd.f32 %v478, %v577
  %v579 = vpop.f32.mrb[0].mxu0
  %580 = vmatprep.mubr.f32.mxu0 0.0
  %581 = vmatmul.mubr.f32.gmra.mrb[0].mxu0 %v336
  %v582 = vpop.f32.mrb[0].mxu0
  %v583 = vadd.f32 %v483, %v582
  %v584 = vpop.f32.mrb[0].mxu0
  %585 = vdwg.mxu0
  %586 = vmatprep.subr.mxu0 0.0
  %587 = vmatpush1.msra.mxu0 %v264
  %588 = vmatprep.subr.mxu0 0.0
  %589 = vmatpush1.msra.mxu0 %v265
  %590 = vmatprep.subr.mxu0 0.0
  %591 = vmatpush1.msra.mxu0 %v266
  %592 = vmatprep.subr.mxu0 0.0
  %593 = vmatpush1.msra.mxu0 %v267
  %594 = vmatprep.subr.mxu0 0.0
  %595 = vmatpush1.msra.mxu0 %v268
  %596 = vmatprep.subr.mxu0 0.0
  %597 = vmatpush1.msra.mxu0 %v269
  %598 = vmatprep.subr.mxu0 0.0
  %599 = vmatpush1.msra.mxu0 %v270
  %600 = vmatprep.subr.mxu0 0.0
  %601 = vmatpush1.msra.mxu0 %v271
  %602 = vmatprep.subr.mxu0 0.0
  %603 = vmatpush1.msra.mxu0 %v272
  %604 = vmatprep.subr.mxu0 0.0
  %605 = vmatpush1.msra.mxu0 %v273
  %606 = vmatprep.subr.mxu0 0.0
  %607 = vmatpush1.msra.mxu0 %v274
  %608 = vmatprep.subr.mxu0 0.0
  %609 = vmatpush1.msra.mxu0 %v275
  %610 = vmatprep.subr.mxu0 0.0
  %611 = vmatpush1.msra.mxu0 %v276
  %612 = vmatprep.subr.mxu0 0.0
  %613 = vmatpush1.msra.mxu0 %v277
  %614 = vmatprep.subr.mxu0 0.0
  %615 = vmatpush1.msra.mxu0 %v278
  %616 = vmatprep.subr.mxu0 0.0
  %617 = vmatpush1.msra.mxu0 %v279
  %618 = vmatprep.subr.mxu0 0.0
  %619 = vmatpush1.msra.mxu0 %v280
  %620 = vmatprep.subr.mxu0 0.0
  %621 = vmatpush1.msra.mxu0 %v281
  %622 = vmatprep.subr.mxu0 0.0
  %623 = vmatpush1.msra.mxu0 %v282
  %624 = vmatprep.subr.mxu0 0.0
  %625 = vmatpush1.msra.mxu0 %v283
  %626 = vmatprep.subr.mxu0 0.0
  %627 = vmatpush1.msra.mxu0 %v284
  %628 = vmatprep.subr.mxu0 0.0
  %629 = vmatpush1.msra.mxu0 %v285
  %630 = vmatprep.subr.mxu0 0.0
  %631 = vmatpush1.msra.mxu0 %v286
  %632 = vmatprep.subr.mxu0 0.0
  %633 = vmatpush1.msra.mxu0 %v287
  %634 = vmatprep.subr.mxu0 0.0
  %635 = vmatpush1.msra.mxu0 %v288
  %636 = vmatprep.subr.mxu0 0.0
  %637 = vmatpush1.msra.mxu0 %v289
  %638 = vmatprep.subr.mxu0 0.0
  %639 = vmatpush1.msra.mxu0 %v290
  %640 = vmatprep.subr.mxu0 0.0
  %641 = vmatpush1.msra.mxu0 %v291
  %642 = vmatprep.subr.mxu0 0.0
  %643 = vmatpush1.msra.mxu0 %v292
  %644 = vmatprep.subr.mxu0 0.0
  %645 = vmatpush1.msra.mxu0 %v293
  %646 = vmatprep.subr.mxu0 0.0
  %647 = vmatpush1.msra.mxu0 %v294
  %648 = vmatprep.subr.mxu0 0.0
  %649 = vmatpush1.msra.mxu0 %v295
  %650 = vmatprep.mubr.f32.mxu0 %v243
  %651 = vmatmul.mubr.f32.gmra.mrb[0].mxu0 %v236
  %v652 = vpop.f32.mrb[0].mxu0
  %v653 = vadd.f32 %v553, %v652
  %v654 = vpop.f32.mrb[0].mxu0
  %655 = vmatprep.mubr.f32.mxu0 %v244
  %656 = vmatmul.mubr.f32.gmra.mrb[0].mxu0 %v237
  %v657 = vpop.f32.mrb[0].mxu0
  %v658 = vadd.f32 %v558, %v657
  %v659 = vpop.f32.mrb[0].mxu0
  %660 = vmatprep.mubr.f32.mxu0 %v245
  %661 = vmatmul.mubr.f32.gmra.mrb[0].mxu0 %v238
  %v662 = vpop.f32.mrb[0].mxu0
  %v663 = vadd.f32 %v563, %v662
  %v664 = vpop.f32.mrb[0].mxu0
  %665 = vmatprep.mubr.f32.mxu0 %v246
  %666 = vmatmul.mubr.f32.gmra.mrb[0].mxu0 %v239
  %v667 = vpop.f32.mrb[0].mxu0
  %v668 = vadd.f32 %v568, %v667
  %v669 = vpop.f32.mrb[0].mxu0
  %670 = vmatprep.mubr.f32.mxu0 %v247
  %671 = vmatmul.mubr.f32.gmra.mrb[0].mxu0 %v240
  %v672 = vpop.f32.mrb[0].mxu0
  %v673 = vadd.f32 %v573, %v672
  %v674 = vpop.f32.mrb[0].mxu0
  %675 = vmatprep.mubr.f32.mxu0 %v248
  %676 = vmatmul.mubr.f32.gmra.mrb[0].mxu0 %v241
  %v677 = vpop.f32.mrb[0].mxu0
  %v678 = vadd.f32 %v578, %v677
  %v679 = vpop.f32.mrb[0].mxu0
  %680 = vmatprep.mubr.f32.mxu0 %v249
  %681 = vmatmul.mubr.f32.gmra.mrb[0].mxu0 %v242
  %v682 = vpop.f32.mrb[0].mxu0
  %v683 = vadd.f32 %v583, %v682
  %v684 = vpop.f32.mrb[0].mxu0
  %685 = vdwg.mxu0
  %686 = vmatprep.subr.mxu0 0.0
  %687 = vmatpush1.msra.mxu0 %v296
  %688 = vmatprep.subr.mxu0 0.0
  %689 = vmatpush1.msra.mxu0 %v297
  %690 = vmatprep.subr.mxu0 0.0
  %691 = vmatpush1.msra.mxu0 %v298
  %692 = vmatprep.subr.mxu0 0.0
  %693 = vmatpush1.msra.mxu0 %v299
  %694 = vmatprep.subr.mxu0 0.0
  %695 = vmatpush1.msra.mxu0 %v300
  %696 = vmatprep.subr.mxu0 0.0
  %697 = vmatpush1.msra.mxu0 %v301
  %698 = vmatprep.subr.mxu0 0.0
  %699 = vmatpush1.msra.mxu0 %v302
  %700 = vmatprep.subr.mxu0 0.0
  %701 = vmatpush1.msra.mxu0 %v303
  %702 = vmatprep.subr.mxu0 0.0
  %703 = vmatpush1.msra.mxu0 %v304
  %704 = vmatprep.subr.mxu0 0.0
  %705 = vmatpush1.msra.mxu0 %v305
  %706 = vmatprep.subr.mxu0 0.0
  %707 = vmatpush1.msra.mxu0 %v306
  %708 = vmatprep.subr.mxu0 0.0
  %709 = vmatpush1.msra.mxu0 %v307
  %710 = vmatprep.subr.mxu0 0.0
  %711 = vmatpush1.msra.mxu0 %v308
  %712 = vmatprep.subr.mxu0 0.0
  %713 = vmatpush1.msra.mxu0 %v309
  %714 = vmatprep.subr.mxu0 0.0
  %715 = vmatpush1.msra.mxu0 %v310
  %716 = vmatprep.subr.mxu0 0.0
  %717 = vmatpush1.msra.mxu0 %v311
  %718 = vmatprep.subr.mxu0 0.0
  %719 = vmatpush1.msra.mxu0 0.0
  %720 = vmatprep.subr.mxu0 0.0
  %721 = vmatpush1.msra.mxu0 0.0
  %722 = vmatprep.subr.mxu0 0.0
  %723 = vmatpush1.msra.mxu0 0.0
  %724 = vmatprep.subr.mxu0 0.0
  %725 = vmatpush1.msra.mxu0 0.0
  %726 = vmatprep.subr.mxu0 0.0
  %727 = vmatpush1.msra.mxu0 0.0
  %728 = vmatprep.subr.mxu0 0.0
  %729 = vmatpush1.msra.mxu0 0.0
  %730 = vmatprep.subr.mxu0 0.0
  %731 = vmatpush1.msra.mxu0 0.0
  %732 = vmatprep.subr.mxu0 0.0
  %733 = vmatpush1.msra.mxu0 0.0
  %734 = vmatprep.subr.mxu0 0.0
  %735 = vmatpush1.msra.mxu0 0.0
  %736 = vmatprep.subr.mxu0 0.0
  %737 = vmatpush1.msra.mxu0 0.0
  %738 = vmatprep.subr.mxu0 0.0
  %739 = vmatpush1.msra.mxu0 0.0
  %740 = vmatprep.subr.mxu0 0.0
  %741 = vmatpush1.msra.mxu0 0.0
  %742 = vmatprep.subr.mxu0 0.0
  %743 = vmatpush1.msra.mxu0 0.0
  %744 = vmatprep.subr.mxu0 0.0
  %745 = vmatpush1.msra.mxu0 0.0
  %746 = vmatprep.subr.mxu0 0.0
  %747 = vmatpush1.msra.mxu0 0.0
  %748 = vmatprep.subr.mxu0 0.0
  %749 = vmatpush1.msra.mxu0 0.0
  %750 = vmatprep.mubr.f32.mxu0 0.0
  %751 = vmatmul.mubr.f32.gmra.mrb[0].mxu0 %v257
  %v752 = vpop.f32.mrb[0].mxu0
  %v753 = vadd.f32 %v653, %v752
  %v754 = vpop.f32.mrb[0].mxu0
  %755 = vmatprep.mubr.f32.mxu0 0.0
  %756 = vmatmul.mubr.f32.gmra.mrb[0].mxu0 %v258
  %v757 = vpop.f32.mrb[0].mxu0
  %v758 = vadd.f32 %v658, %v757
  %v759 = vpop.f32.mrb[0].mxu0
  %760 = vmatprep.mubr.f32.mxu0 0.0
  %761 = vmatmul.mubr.f32.gmra.mrb[0].mxu0 %v259
  %v762 = vpop.f32.mrb[0].mxu0
  %v763 = vadd.f32 %v663, %v762
  %v764 = vpop.f32.mrb[0].mxu0
  %765 = vmatprep.mubr.f32.mxu0 0.0
  %766 = vmatmul.mubr.f32.gmra.mrb[0].mxu0 %v260
  %v767 = vpop.f32.mrb[0].mxu0
  %v768 = vadd.f32 %v668, %v767
  %v769 = vpop.f32.mrb[0].mxu0
  %770 = vmatprep.mubr.f32.mxu0 0.0
  %771 = vmatmul.mubr.f32.gmra.mrb[0].mxu0 %v261
  %v772 = vpop.f32.mrb[0].mxu0
  %v773 = vadd.f32 %v673, %v772
  %v774 = vpop.f32.mrb[0].mxu0
  %775 = vmatprep.mubr.f32.mxu0 0.0
  %776 = vmatmul.mubr.f32.gmra.mrb[0].mxu0 %v262
  %v777 = vpop.f32.mrb[0].mxu0
  %v778 = vadd.f32 %v678, %v777
  %v779 = vpop.f32.mrb[0].mxu0
  %780 = vmatprep.mubr.f32.mxu0 0.0
  %781 = vmatmul.mubr.f32.gmra.mrb[0].mxu0 %v263
  %v782 = vpop.f32.mrb[0].mxu0
  %v783 = vadd.f32 %v683, %v782
  %v784 = vpop.f32.mrb[0].mxu0
  %785 = vdwg.mxu0
  %v786 = vld [vmem:[#allocation2 + $0xe] sm:$0xff]
  %v787 = vld [vmem:[#allocation2 + $0x16] sm:$0xff]
  %v788 = vld [vmem:[#allocation2 + $0x1e] sm:$0xff]
  %v789 = vld [vmem:[#allocation2 + $0x26] sm:$0xff]
  %v790 = vld [vmem:[#allocation2 + $0x2e] sm:$0xff]
  %v791 = vld [vmem:[#allocation2 + $0x36] sm:$0xff]
  %v792 = vld [vmem:[#allocation2 + $0x3e] sm:$0x1]
  %v793 = vmul.f32 %v786, %v201
  %v794 = vmul.f32 %v787, %v202
  %v795 = vmul.f32 %v788, %v203
  %v796 = vmul.f32 %v789, %v204
  %v797 = vmul.f32 %v790, %v205
  %v798 = vmul.f32 %v791, %v206
  %v799 = vmul.f32 %v792, %v207
  %v800 = vld [vmem:[#allocation2 + $0xf] sm:$0xff]
  %v801 = vld [vmem:[#allocation2 + $0x17] sm:$0xff]
  %v802 = vld [vmem:[#allocation2 + $0x1f] sm:$0xff]
  %v803 = vld [vmem:[#allocation2 + $0x27] sm:$0xff]
  %v804 = vld [vmem:[#allocation2 + $0x2f] sm:$0xff]
  %v805 = vld [vmem:[#allocation2 + $0x37] sm:$0xff]
  %v806 = vld [vmem:[#allocation2 + $0x3f] sm:$0x1]
  %v807 = vld [vmem:[#allocation2 + $0x10] sm:$0xff]
  %v808 = vld [vmem:[#allocation2 + $0x18] sm:$0xff]
  %v809 = vld [vmem:[#allocation2 + $0x20] sm:$0xff]
  %v810 = vld [vmem:[#allocation2 + $0x28] sm:$0xff]
  %v811 = vld [vmem:[#allocation2 + $0x30] sm:$0xff]
  %v812 = vld [vmem:[#allocation2 + $0x38] sm:$0xff]
  %v813 = vld [vmem:[#allocation2 + $0x40] sm:$0x1]
  %v814 = vmul.f32 %v807, %v222
  %v815 = vmul.f32 %v808, %v223
  %v816 = vmul.f32 %v809, %v224
  %v817 = vmul.f32 %v810, %v225
  %v818 = vmul.f32 %v811, %v226
  %v819 = vmul.f32 %v812, %v227
  %v820 = vmul.f32 %v813, %v228
  %s821 = scalar_lea.vmem %s1, 768
  %v822 = vld [vmem:[%s821] sm:$0xff]
  %v823 = vld [vmem:[%s821 + $0x8] sm:$0xff]
  %v824 = vld [vmem:[%s821 + $0x10] sm:$0xff]
  %v825 = vld [vmem:[%s821 + $0x18] sm:$0xff]
  %v826 = vld [vmem:[%s821 + $0x20] sm:$0xff]
  %v827 = vld [vmem:[%s821 + $0x28] sm:$0xff]
  %v828 = vld [vmem:[%s821 + $0x30] sm:$0xff]
  %v829 = vld [vmem:[%s821 + $0x38] sm:$0xff]
  %v830 = vld [vmem:[%s821 + $0x40] sm:$0xff]
  %v831 = vld [vmem:[%s821 + $0x48] sm:$0xff]
  %v832 = vld [vmem:[%s821 + $0x50] sm:$0xff]
  %v833 = vld [vmem:[%s821 + $0x58] sm:$0xff]
  %v834 = vld [vmem:[%s821 + $0x60] sm:$0xff]
  %v835 = vld [vmem:[%s821 + $0x68] sm:$0xff]
  %v836 = vld [vmem:[%s821 + $0x70] sm:$0xff]
  %v837 = vld [vmem:[%s821 + $0x78] sm:$0xff]
  %v838 = vld [vmem:[%s821 + $0x80] sm:$0xff]
  %v839 = vld [vmem:[%s821 + $0x88] sm:$0xff]
  %v840 = vld [vmem:[%s821 + $0x90] sm:$0xff]
  %v841 = vld [vmem:[%s821 + $0x98] sm:$0xff]
  %v842 = vld [vmem:[%s821 + $0xa0] sm:$0xff]
  %v843 = vld [vmem:[%s821 + $0xa8] sm:$0xff]
  %v844 = vld [vmem:[%s821 + $0xb0] sm:$0xff]
  %v845 = vld [vmem:[%s821 + $0xb8] sm:$0xff]
  %v846 = vld [vmem:[%s821 + $0xc0] sm:$0xff]
  %v847 = vld [vmem:[%s821 + $0xc8] sm:$0xff]
  %v848 = vld [vmem:[%s821 + $0xd0] sm:$0xff]
  %v849 = vld [vmem:[%s821 + $0xd8] sm:$0xff]
  %v850 = vld [vmem:[%s821 + $0xe0] sm:$0xff]
  %v851 = vld [vmem:[%s821 + $0xe8] sm:$0xff]
  %v852 = vld [vmem:[%s821 + $0xf0] sm:$0xff]
  %v853 = vld [vmem:[%s821 + $0xf8] sm:$0xff]
  %v854 = vld [vmem:[%s821 + $0x100] sm:$0xff]
  %v855 = vld [vmem:[%s821 + $0x108] sm:$0xff]
  %v856 = vld [vmem:[%s821 + $0x110] sm:$0xff]
  %v857 = vld [vmem:[%s821 + $0x118] sm:$0xff]
  %v858 = vld [vmem:[%s821 + $0x120] sm:$0xff]
  %v859 = vld [vmem:[%s821 + $0x128] sm:$0xff]
  %v860 = vld [vmem:[%s821 + $0x130] sm:$0xff]
  %v861 = vld [vmem:[%s821 + $0x138] sm:$0xff]
  %v862 = vld [vmem:[%s821 + $0x140] sm:$0xff]
  %v863 = vld [vmem:[%s821 + $0x148] sm:$0xff]
  %v864 = vld [vmem:[%s821 + $0x150] sm:$0xff]
  %v865 = vld [vmem:[%s821 + $0x158] sm:$0xff]
  %v866 = vld [vmem:[%s821 + $0x160] sm:$0xff]
  %v867 = vld [vmem:[%s821 + $0x168] sm:$0xff]
  %v868 = vld [vmem:[%s821 + $0x170] sm:$0xff]
  %v869 = vld [vmem:[%s821 + $0x178] sm:$0xff]
  %870 = vmatprep.subr.mxu0 0.0
  %871 = vmatpush1.msra.mxu0 %v822
  %872 = vmatprep.subr.mxu0 0.0
  %873 = vmatpush1.msra.mxu0 %v823
  %874 = vmatprep.subr.mxu0 0.0
  %875 = vmatpush1.msra.mxu0 %v824
  %876 = vmatprep.subr.mxu0 0.0
  %877 = vmatpush1.msra.mxu0 %v825
  %878 = vmatprep.subr.mxu0 0.0
  %879 = vmatpush1.msra.mxu0 %v826
  %880 = vmatprep.subr.mxu0 0.0
  %881 = vmatpush1.msra.mxu0 %v827
  %882 = vmatprep.subr.mxu0 0.0
  %883 = vmatpush1.msra.mxu0 %v828
  %884 = vmatprep.subr.mxu0 0.0
  %885 = vmatpush1.msra.mxu0 %v829
  %886 = vmatprep.subr.mxu0 0.0
  %887 = vmatpush1.msra.mxu0 %v830
  %888 = vmatprep.subr.mxu0 0.0
  %889 = vmatpush1.msra.mxu0 %v831
  %890 = vmatprep.subr.mxu0 0.0
  %891 = vmatpush1.msra.mxu0 %v832
  %892 = vmatprep.subr.mxu0 0.0
  %893 = vmatpush1.msra.mxu0 %v833
  %894 = vmatprep.subr.mxu0 0.0
  %895 = vmatpush1.msra.mxu0 %v834
  %896 = vmatprep.subr.mxu0 0.0
  %897 = vmatpush1.msra.mxu0 %v835
  %898 = vmatprep.subr.mxu0 0.0
  %899 = vmatpush1.msra.mxu0 %v836
  %900 = vmatprep.subr.mxu0 0.0
  %901 = vmatpush1.msra.mxu0 %v837
  %902 = vmatprep.subr.mxu0 0.0
  %903 = vmatpush1.msra.mxu0 %v838
  %904 = vmatprep.subr.mxu0 0.0
  %905 = vmatpush1.msra.mxu0 %v839
  %906 = vmatprep.subr.mxu0 0.0
  %907 = vmatpush1.msra.mxu0 %v840
  %908 = vmatprep.subr.mxu0 0.0
  %909 = vmatpush1.msra.mxu0 %v841
  %910 = vmatprep.subr.mxu0 0.0
  %911 = vmatpush1.msra.mxu0 %v842
  %912 = vmatprep.subr.mxu0 0.0
  %913 = vmatpush1.msra.mxu0 %v843
  %914 = vmatprep.subr.mxu0 0.0
  %915 = vmatpush1.msra.mxu0 %v844
  %916 = vmatprep.subr.mxu0 0.0
  %917 = vmatpush1.msra.mxu0 %v845
  %918 = vmatprep.subr.mxu0 0.0
  %919 = vmatpush1.msra.mxu0 %v846
  %920 = vmatprep.subr.mxu0 0.0
  %921 = vmatpush1.msra.mxu0 %v847
  %922 = vmatprep.subr.mxu0 0.0
  %923 = vmatpush1.msra.mxu0 %v848
  %924 = vmatprep.subr.mxu0 0.0
  %925 = vmatpush1.msra.mxu0 %v849
  %926 = vmatprep.subr.mxu0 0.0
  %927 = vmatpush1.msra.mxu0 %v850
  %928 = vmatprep.subr.mxu0 0.0
  %929 = vmatpush1.msra.mxu0 %v851
  %930 = vmatprep.subr.mxu0 0.0
  %931 = vmatpush1.msra.mxu0 %v852
  %932 = vmatprep.subr.mxu0 0.0
  %933 = vmatpush1.msra.mxu0 %v853
  %934 = vmatprep.mubr.f32.mxu0 %v800
  %935 = vmatmul.mubr.f32.gmra.mrb[0].mxu0 %v793
  %v936 = vpop.f32.mrb[0].mxu0
  %v937 = vadd.f32 0.0, %v936
  %v938 = vpop.f32.mrb[0].mxu0
  %939 = vmatprep.mubr.f32.mxu0 %v801
  %940 = vmatmul.mubr.f32.gmra.mrb[0].mxu0 %v794
  %v941 = vpop.f32.mrb[0].mxu0
  %v942 = vadd.f32 0.0, %v941
  %v943 = vpop.f32.mrb[0].mxu0
  %944 = vmatprep.mubr.f32.mxu0 %v802
  %945 = vmatmul.mubr.f32.gmra.mrb[0].mxu0 %v795
  %v946 = vpop.f32.mrb[0].mxu0
  %v947 = vadd.f32 0.0, %v946
  %v948 = vpop.f32.mrb[0].mxu0
  %949 = vmatprep.mubr.f32.mxu0 %v803
  %950 = vmatmul.mubr.f32.gmra.mrb[0].mxu0 %v796
  %v951 = vpop.f32.mrb[0].mxu0
  %v952 = vadd.f32 0.0, %v951
  %v953 = vpop.f32.mrb[0].mxu0
  %954 = vmatprep.mubr.f32.mxu0 %v804
  %955 = vmatmul.mubr.f32.gmra.mrb[0].mxu0 %v797
  %v956 = vpop.f32.mrb[0].mxu0
  %v957 = vadd.f32 0.0, %v956
  %v958 = vpop.f32.mrb[0].mxu0
  %959 = vmatprep.mubr.f32.mxu0 %v805
  %960 = vmatmul.mubr.f32.gmra.mrb[0].mxu0 %v798
  %v961 = vpop.f32.mrb[0].mxu0
  %v962 = vadd.f32 0.0, %v961
  %v963 = vpop.f32.mrb[0].mxu0
  %964 = vmatprep.mubr.f32.mxu0 %v806
  %965 = vmatmul.mubr.f32.gmra.mrb[0].mxu0 %v799
  %v966 = vpop.f32.mrb[0].mxu0
  %v967 = vadd.f32 0.0, %v966
  %v968 = vpop.f32.mrb[0].mxu0
  %969 = vdwg.mxu0
  %970 = vmatprep.subr.mxu0 0.0
  %971 = vmatpush1.msra.mxu0 %v854
  %972 = vmatprep.subr.mxu0 0.0
  %973 = vmatpush1.msra.mxu0 %v855
  %974 = vmatprep.subr.mxu0 0.0
  %975 = vmatpush1.msra.mxu0 %v856
  %976 = vmatprep.subr.mxu0 0.0
  %977 = vmatpush1.msra.mxu0 %v857
  %978 = vmatprep.subr.mxu0 0.0
  %979 = vmatpush1.msra.mxu0 %v858
  %980 = vmatprep.subr.mxu0 0.0
  %981 = vmatpush1.msra.mxu0 %v859
  %982 = vmatprep.subr.mxu0 0.0
  %983 = vmatpush1.msra.mxu0 %v860
  %984 = vmatprep.subr.mxu0 0.0
  %985 = vmatpush1.msra.mxu0 %v861
  %986 = vmatprep.subr.mxu0 0.0
  %987 = vmatpush1.msra.mxu0 %v862
  %988 = vmatprep.subr.mxu0 0.0
  %989 = vmatpush1.msra.mxu0 %v863
  %990 = vmatprep.subr.mxu0 0.0
  %991 = vmatpush1.msra.mxu0 %v864
  %992 = vmatprep.subr.mxu0 0.0
  %993 = vmatpush1.msra.mxu0 %v865
  %994 = vmatprep.subr.mxu0 0.0
  %995 = vmatpush1.msra.mxu0 %v866
  %996 = vmatprep.subr.mxu0 0.0
  %997 = vmatpush1.msra.mxu0 %v867
  %998 = vmatprep.subr.mxu0 0.0
  %999 = vmatpush1.msra.mxu0 %v868
  %1000 = vmatprep.subr.mxu0 0.0
  %1001 = vmatpush1.msra.mxu0 %v869
  %1002 = vmatprep.subr.mxu0 0.0
  %1003 = vmatpush1.msra.mxu0 0.0
  %1004 = vmatprep.subr.mxu0 0.0
  %1005 = vmatpush1.msra.mxu0 0.0
  %1006 = vmatprep.subr.mxu0 0.0
  %1007 = vmatpush1.msra.mxu0 0.0
  %1008 = vmatprep.subr.mxu0 0.0
  %1009 = vmatpush1.msra.mxu0 0.0
  %1010 = vmatprep.subr.mxu0 0.0
  %1011 = vmatpush1.msra.mxu0 0.0
  %1012 = vmatprep.subr.mxu0 0.0
  %1013 = vmatpush1.msra.mxu0 0.0
  %1014 = vmatprep.subr.mxu0 0.0
  %1015 = vmatpush1.msra.mxu0 0.0
  %1016 = vmatprep.subr.mxu0 0.0
  %1017 = vmatpush1.msra.mxu0 0.0
  %1018 = vmatprep.subr.mxu0 0.0
  %1019 = vmatpush1.msra.mxu0 0.0
  %1020 = vmatprep.subr.mxu0 0.0
  %1021 = vmatpush1.msra.mxu0 0.0
  %1022 = vmatprep.subr.mxu0 0.0
  %1023 = vmatpush1.msra.mxu0 0.0
  %1024 = vmatprep.subr.mxu0 0.0
  %1025 = vmatpush1.msra.mxu0 0.0
  %1026 = vmatprep.subr.mxu0 0.0
  %1027 = vmatpush1.msra.mxu0 0.0
  %1028 = vmatprep.subr.mxu0 0.0
  %1029 = vmatpush1.msra.mxu0 0.0
  %1030 = vmatprep.subr.mxu0 0.0
  %1031 = vmatpush1.msra.mxu0 0.0
  %1032 = vmatprep.subr.mxu0 0.0
  %1033 = vmatpush1.msra.mxu0 0.0
  %1034 = vmatprep.mubr.f32.mxu0 0.0
  %1035 = vmatmul.mubr.f32.gmra.mrb[0].mxu0 %v814
  %v1036 = vpop.f32.mrb[0].mxu0
  %v1037 = vadd.f32 %v937, %v1036
  %v1038 = vpop.f32.mrb[0].mxu0
  %1039 = vmatprep.mubr.f32.mxu0 0.0
  %1040 = vmatmul.mubr.f32.gmra.mrb[0].mxu0 %v815
  %v1041 = vpop.f32.mrb[0].mxu0
  %v1042 = vadd.f32 %v942, %v1041
  %v1043 = vpop.f32.mrb[0].mxu0
  %1044 = vmatprep.mubr.f32.mxu0 0.0
  %1045 = vmatmul.mubr.f32.gmra.mrb[0].mxu0 %v816
  %v1046 = vpop.f32.mrb[0].mxu0
  %v1047 = vadd.f32 %v947, %v1046
  %v1048 = vpop.f32.mrb[0].mxu0
  %1049 = vmatprep.mubr.f32.mxu0 0.0
  %1050 = vmatmul.mubr.f32.gmra.mrb[0].mxu0 %v817
  %v1051 = vpop.f32.mrb[0].mxu0
  %v1052 = vadd.f32 %v952, %v1051
  %v1053 = vpop.f32.mrb[0].mxu0
  %1054 = vmatprep.mubr.f32.mxu0 0.0
  %1055 = vmatmul.mubr.f32.gmra.mrb[0].mxu0 %v818
  %v1056 = vpop.f32.mrb[0].mxu0
  %v1057 = vadd.f32 %v957, %v1056
  %v1058 = vpop.f32.mrb[0].mxu0
  %1059 = vmatprep.mubr.f32.mxu0 0.0
  %1060 = vmatmul.mubr.f32.gmra.mrb[0].mxu0 %v819
  %v1061 = vpop.f32.mrb[0].mxu0
  %v1062 = vadd.f32 %v962, %v1061
  %v1063 = vpop.f32.mrb[0].mxu0
  %1064 = vmatprep.mubr.f32.mxu0 0.0
  %1065 = vmatmul.mubr.f32.gmra.mrb[0].mxu0 %v820
  %v1066 = vpop.f32.mrb[0].mxu0
  %v1067 = vadd.f32 %v967, %v1066
  %v1068 = vpop.f32.mrb[0].mxu0
  %1069 = vdwg.mxu0
  %v1070 = vadd.f32 %v753, %v1037
  %v1071 = vadd.f32 %v758, %v1042
  %v1072 = vadd.f32 %v763, %v1047
  %v1073 = vadd.f32 %v768, %v1052
  %v1074 = vadd.f32 %v773, %v1057
  %v1075 = vadd.f32 %v778, %v1062
  %v1076 = vadd.f32 %v783, %v1067
  %s1077 = scalar_lea.vmem %s3, 224
  %v1078 = vld [vmem:[%s1077] sm:$0xff]
  %v1079 = vld [vmem:[%s1077 + $0x8] sm:$0xff]
  %v1080 = vld [vmem:[%s1077 + $0x10] sm:$0xff]
  %v1081 = vld [vmem:[%s1077 + $0x18] sm:$0xff]
  %v1082 = vld [vmem:[%s1077 + $0x20] sm:$0xff]
  %v1083 = vld [vmem:[%s1077 + $0x28] sm:$0xff]
  %v1084 = vld [vmem:[%s1077 + $0x30] sm:$0x1]
  %s1085 = scalar_lea.vmem %s3, 280
  %v1086 = vld [vmem:[%s1085] sm:$0xff]
  %v1087 = vld [vmem:[%s1085 + $0x8] sm:$0xff]
  %v1088 = vld [vmem:[%s1085 + $0x10] sm:$0xff]
  %v1089 = vld [vmem:[%s1085 + $0x18] sm:$0xff]
  %v1090 = vld [vmem:[%s1085 + $0x20] sm:$0xff]
  %v1091 = vld [vmem:[%s1085 + $0x28] sm:$0xff]
  %v1092 = vld [vmem:[%s1085 + $0x30] sm:$0x1]
  %s1093 = scalar_lea.vmem %s3, 336
  %v1094 = vld [vmem:[%s1093] sm:$0xff]
  %v1095 = vld [vmem:[%s1093 + $0x8] sm:$0xff]
  %v1096 = vld [vmem:[%s1093 + $0x10] sm:$0xff]
  %v1097 = vld [vmem:[%s1093 + $0x18] sm:$0xff]
  %v1098 = vld [vmem:[%s1093 + $0x20] sm:$0xff]
  %v1099 = vld [vmem:[%s1093 + $0x28] sm:$0xff]
  %v1100 = vld [vmem:[%s1093 + $0x30] sm:$0x1]
  %1108 = vrot.lane.b32.xlu0 %v1086, 32
  %v1109 = vpop.permute.xlu0 %1108
  %1110 = vrot.lane.b32.xlu0 %v1087, 32
  %v1111 = vpop.permute.xlu0 %1110
  %1112 = vrot.lane.b32.xlu0 %v1088, 32
  %v1113 = vpop.permute.xlu0 %1112
  %1114 = vrot.lane.b32.xlu0 %v1089, 32
  %v1115 = vpop.permute.xlu0 %1114
  %1116 = vrot.lane.b32.xlu0 %v1090, 32
  %v1117 = vpop.permute.xlu0 %1116
  %1118 = vrot.lane.b32.xlu0 %v1091, 32
  %v1119 = vpop.permute.xlu0 %1118
  %1120 = vrot.lane.b32.xlu0 %v1092, 32
  %v1121 = vpop.permute.xlu0 %1120
  %1136 = vrot.lane.b32.xlu0 %v1094, 64
  %v1137 = vpop.permute.xlu0 %1136
  %1138 = vrot.lane.b32.xlu0 %v1095, 64
  %v1139 = vpop.permute.xlu0 %1138
  %1140 = vrot.lane.b32.xlu0 %v1096, 64
  %v1141 = vpop.permute.xlu0 %1140
  %1142 = vrot.lane.b32.xlu0 %v1097, 64
  %v1143 = vpop.permute.xlu0 %1142
  %1144 = vrot.lane.b32.xlu0 %v1098, 64
  %v1145 = vpop.permute.xlu0 %1144
  %1146 = vrot.lane.b32.xlu0 %v1099, 64
  %v1147 = vpop.permute.xlu0 %1146
  %1148 = vrot.lane.b32.xlu0 %v1100, 64
  %v1149 = vpop.permute.xlu0 %1148
  %1164 = vrot.lane.b32.xlu0 %v1070, 96
  %v1165 = vpop.permute.xlu0 %1164
  %1166 = vrot.lane.b32.xlu0 %v1071, 96
  %v1167 = vpop.permute.xlu0 %1166
  %1168 = vrot.lane.b32.xlu0 %v1072, 96
  %v1169 = vpop.permute.xlu0 %1168
  %1170 = vrot.lane.b32.xlu0 %v1073, 96
  %v1171 = vpop.permute.xlu0 %1170
  %1172 = vrot.lane.b32.xlu0 %v1074, 96
  %v1173 = vpop.permute.xlu0 %1172
  %1174 = vrot.lane.b32.xlu0 %v1075, 96
  %v1175 = vpop.permute.xlu0 %1174
  %1176 = vrot.lane.b32.xlu0 %v1076, 96
  %v1177 = vpop.permute.xlu0 %1176
  %vm1185 = vcmask 261120
  %v1186 = vsel %vm1185, %v1078, %v1109
  %v1187 = vsel %vm1185, %v1079, %v1111
  %v1188 = vsel %vm1185, %v1080, %v1113
  %v1189 = vsel %vm1185, %v1081, %v1115
  %v1190 = vsel %vm1185, %v1082, %v1117
  %v1191 = vsel %vm1185, %v1083, %v1119
  %v1192 = vsel %vm1185, %v1084, %v1121
  %vm1193 = vcmask 523264
  %v1194 = vsel %vm1193, %v1186, %v1137
  %v1195 = vsel %vm1193, %v1187, %v1139
  %v1196 = vsel %vm1193, %v1188, %v1141
  %v1197 = vsel %vm1193, %v1189, %v1143
  %v1198 = vsel %vm1193, %v1190, %v1145
  %v1199 = vsel %vm1193, %v1191, %v1147
  %v1200 = vsel %vm1193, %v1192, %v1149
  %vm1201 = vcmask 785408
  %v1202 = vsel %vm1201, %v1194, %v1165
  %v1203 = vsel %vm1201, %v1195, %v1167
  %v1204 = vsel %vm1201, %v1196, %v1169
  %v1205 = vsel %vm1201, %v1197, %v1171
  %v1206 = vsel %vm1201, %v1198, %v1173
  %v1207 = vsel %vm1201, %v1199, %v1175
  %v1208 = vsel %vm1201, %v1200, %v1177
  %v1209 = vld [vmem:[%s4 + $0x8] sm:$0x1]
  %v1210 = vld [vmem:[%s5 + $0x8] sm:$0x1]
  %v1211 = vadd.f32 %v1202, %v1203
  %v1212 = vadd.f32 %v1211, %v1204
  %v1213 = vadd.f32 %v1212, %v1205
  %v1214 = vadd.f32 %v1213, %v1206
  %v1215 = vadd.f32 %v1214, %v1207
  %vm1216 = vcmask 1040384
  %v1217 = vsel %vm1216, %v1208, 0.0
  %v1218 = vadd.f32 %v1215, %v1217
  %v1219 = vrot.slane %v1218, 4
  %v1220 = vadd.f32 %v1218, %v1219
  %v1221 = vrot.slane %v1220, 2
  %v1222 = vadd.f32 %v1220, %v1221
  %v1223 = vrot.slane %v1222, 1
  %v1224 = vadd.f32 %v1222, %v1223
  %v1225 = vmul.f32 %v1202, %v1202
  %v1226 = vmul.f32 %v1203, %v1203
  %v1227 = vmul.f32 %v1204, %v1204
  %v1228 = vmul.f32 %v1205, %v1205
  %v1229 = vmul.f32 %v1206, %v1206
  %v1230 = vmul.f32 %v1207, %v1207
  %v1231 = vmul.f32 %v1208, %v1208
  %v1232 = vadd.f32 %v1225, %v1226
  %v1233 = vadd.f32 %v1232, %v1227
  %v1234 = vadd.f32 %v1233, %v1228
  %v1235 = vadd.f32 %v1234, %v1229
  %v1236 = vadd.f32 %v1235, %v1230
  %v1237 = vsel %vm1216, %v1231, 0.0
  %v1238 = vadd.f32 %v1236, %v1237
  %v1239 = vrot.slane %v1238, 4
  %v1240 = vadd.f32 %v1238, %v1239
  %v1241 = vrot.slane %v1240, 2
  %v1242 = vadd.f32 %v1240, %v1241
  %v1243 = vrot.slane %v1242, 1
  %v1244 = vadd.f32 %v1242, %v1243
  %v1245 = vmul.f32 %v1224, 0.020408163
  %v1246 = vmul.f32 %v1244, 0.020408163
  %v1247 = vmul.f32 %v1245, %v1245
  %v1248 = vsub.f32 %v1246, %v1247
  %v1249 = vadd.f32 %v1248, 1e-05
  %v1250 = vrsqrt.pop %v1249
  %v1251 = vmul.f32 %v1209, %v1250
  %v1252 = vmul.f32 %v1245, %v1251
  %v1253 = vsub.f32 %v1210, %v1252
  %v1255 = vlaneseq
  %v1256 = vshrl.u32 %v1255, 7
  %v1257 = vsub.s32 0, %v1256
  %v1258 = vrot.slane %v1251, %v1257
  %v1260 = vmul.f32 %v1202, %v1258
  %v1261 = vmul.f32 %v1203, %v1258
  %v1262 = vmul.f32 %v1204, %v1258
  %v1263 = vmul.f32 %v1205, %v1258
  %v1264 = vmul.f32 %v1206, %v1258
  %v1265 = vmul.f32 %v1207, %v1258
  %v1266 = vmul.f32 %v1208, %v1258
  %v1268 = vlaneseq
  %v1269 = vshrl.u32 %v1268, 7
  %v1270 = vsub.s32 0, %v1269
  %v1271 = vrot.slane %v1253, %v1270
  %v1273 = vadd.f32 %v1260, %v1271
  %v1274 = vadd.f32 %v1261, %v1271
  %v1275 = vadd.f32 %v1262, %v1271
  %v1276 = vadd.f32 %v1263, %v1271
  %v1277 = vadd.f32 %v1264, %v1271
  %v1278 = vadd.f32 %v1265, %v1271
  %v1279 = vadd.f32 %v1266, %v1271
  %1280 = vst [vmem:[%s6 + $0x40] sm:$0xff] %v1273
  %1281 = vst [vmem:[%s6 + $0x90] sm:$0xff] %v1274
  %1282 = vst [vmem:[%s6 + $0xe0] sm:$0xff] %v1275
  %1283 = vst [vmem:[%s6 + $0x130] sm:$0xff] %v1276
  %1284 = vst [vmem:[%s6 + $0x180] sm:$0xff] %v1277
  %1285 = vst [vmem:[%s6 + $0x1d0] sm:$0xff] %v1278
  %1286 = vst [vmem:[%s6 + $0x220] sm:$0x1] %v1279
  %v1287 = vld [vmem:[%s3] sm:$0xff]
  %v1288 = vld [vmem:[%s3 + $0x8] sm:$0xff]
  %v1289 = vld [vmem:[%s3 + $0x10] sm:$0xff]
  %v1290 = vld [vmem:[%s3 + $0x18] sm:$0xff]
  %v1291 = vld [vmem:[%s3 + $0x20] sm:$0xff]
  %v1292 = vld [vmem:[%s3 + $0x28] sm:$0xff]
  %v1293 = vld [vmem:[%s3 + $0x30] sm:$0x1]
  %s1294 = scalar_lea.vmem %s3, 56
  %v1295 = vld [vmem:[%s1294] sm:$0xff]
  %v1296 = vld [vmem:[%s1294 + $0x8] sm:$0xff]
  %v1297 = vld [vmem:[%s1294 + $0x10] sm:$0xff]
  %v1298 = vld [vmem:[%s1294 + $0x18] sm:$0xff]
  %v1299 = vld [vmem:[%s1294 + $0x20] sm:$0xff]
  %v1300 = vld [vmem:[%s1294 + $0x28] sm:$0xff]
  %v1301 = vld [vmem:[%s1294 + $0x30] sm:$0x1]
  %s1302 = scalar_lea.vmem %s3, 112
  %v1303 = vld [vmem:[%s1302] sm:$0xff]
  %v1304 = vld [vmem:[%s1302 + $0x8] sm:$0xff]
  %v1305 = vld [vmem:[%s1302 + $0x10] sm:$0xff]
  %v1306 = vld [vmem:[%s1302 + $0x18] sm:$0xff]
  %v1307 = vld [vmem:[%s1302 + $0x20] sm:$0xff]
  %v1308 = vld [vmem:[%s1302 + $0x28] sm:$0xff]
  %v1309 = vld [vmem:[%s1302 + $0x30] sm:$0x1]
  %s1310 = scalar_lea.vmem %s3, 168
  %v1311 = vld [vmem:[%s1310] sm:$0xff]
  %v1312 = vld [vmem:[%s1310 + $0x8] sm:$0xff]
  %v1313 = vld [vmem:[%s1310 + $0x10] sm:$0xff]
  %v1314 = vld [vmem:[%s1310 + $0x18] sm:$0xff]
  %v1315 = vld [vmem:[%s1310 + $0x20] sm:$0xff]
  %v1316 = vld [vmem:[%s1310 + $0x28] sm:$0xff]
  %v1317 = vld [vmem:[%s1310 + $0x30] sm:$0x1]
  %1325 = vrot.lane.b32.xlu0 %v1295, 32
  %v1326 = vpop.permute.xlu0 %1325
  %1327 = vrot.lane.b32.xlu0 %v1296, 32
  %v1328 = vpop.permute.xlu0 %1327
  %1329 = vrot.lane.b32.xlu0 %v1297, 32
  %v1330 = vpop.permute.xlu0 %1329
  %1331 = vrot.lane.b32.xlu0 %v1298, 32
  %v1332 = vpop.permute.xlu0 %1331
  %1333 = vrot.lane.b32.xlu0 %v1299, 32
  %v1334 = vpop.permute.xlu0 %1333
  %1335 = vrot.lane.b32.xlu0 %v1300, 32
  %v1336 = vpop.permute.xlu0 %1335
  %1337 = vrot.lane.b32.xlu0 %v1301, 32
  %v1338 = vpop.permute.xlu0 %1337
  %1353 = vrot.lane.b32.xlu0 %v1303, 64
  %v1354 = vpop.permute.xlu0 %1353
  %1355 = vrot.lane.b32.xlu0 %v1304, 64
  %v1356 = vpop.permute.xlu0 %1355
  %1357 = vrot.lane.b32.xlu0 %v1305, 64
  %v1358 = vpop.permute.xlu0 %1357
  %1359 = vrot.lane.b32.xlu0 %v1306, 64
  %v1360 = vpop.permute.xlu0 %1359
  %1361 = vrot.lane.b32.xlu0 %v1307, 64
  %v1362 = vpop.permute.xlu0 %1361
  %1363 = vrot.lane.b32.xlu0 %v1308, 64
  %v1364 = vpop.permute.xlu0 %1363
  %1365 = vrot.lane.b32.xlu0 %v1309, 64
  %v1366 = vpop.permute.xlu0 %1365
  %1381 = vrot.lane.b32.xlu0 %v1311, 96
  %v1382 = vpop.permute.xlu0 %1381
  %1383 = vrot.lane.b32.xlu0 %v1312, 96
  %v1384 = vpop.permute.xlu0 %1383
  %1385 = vrot.lane.b32.xlu0 %v1313, 96
  %v1386 = vpop.permute.xlu0 %1385
  %1387 = vrot.lane.b32.xlu0 %v1314, 96
  %v1388 = vpop.permute.xlu0 %1387
  %1389 = vrot.lane.b32.xlu0 %v1315, 96
  %v1390 = vpop.permute.xlu0 %1389
  %1391 = vrot.lane.b32.xlu0 %v1316, 96
  %v1392 = vpop.permute.xlu0 %1391
  %1393 = vrot.lane.b32.xlu0 %v1317, 96
  %v1394 = vpop.permute.xlu0 %1393
  %v1402 = vsel %vm1185, %v1287, %v1326
  %v1403 = vsel %vm1185, %v1288, %v1328
  %v1404 = vsel %vm1185, %v1289, %v1330
  %v1405 = vsel %vm1185, %v1290, %v1332
  %v1406 = vsel %vm1185, %v1291, %v1334
  %v1407 = vsel %vm1185, %v1292, %v1336
  %v1408 = vsel %vm1185, %v1293, %v1338
  %v1409 = vsel %vm1193, %v1402, %v1354
  %v1410 = vsel %vm1193, %v1403, %v1356
  %v1411 = vsel %vm1193, %v1404, %v1358
  %v1412 = vsel %vm1193, %v1405, %v1360
  %v1413 = vsel %vm1193, %v1406, %v1362
  %v1414 = vsel %vm1193, %v1407, %v1364
  %v1415 = vsel %vm1193, %v1408, %v1366
  %v1416 = vsel %vm1201, %v1409, %v1382
  %v1417 = vsel %vm1201, %v1410, %v1384
  %v1418 = vsel %vm1201, %v1411, %v1386
  %v1419 = vsel %vm1201, %v1412, %v1388
  %v1420 = vsel %vm1201, %v1413, %v1390
  %v1421 = vsel %vm1201, %v1414, %v1392
  %v1422 = vsel %vm1201, %v1415, %v1394
  %v1423 = vld [vmem:[%s4 + $0x7] sm:$0x1]
  %v1424 = vld [vmem:[%s5 + $0x7] sm:$0x1]
  %v1425 = vadd.f32 %v1416, %v1417
  %v1426 = vadd.f32 %v1425, %v1418
  %v1427 = vadd.f32 %v1426, %v1419
  %v1428 = vadd.f32 %v1427, %v1420
  %v1429 = vadd.f32 %v1428, %v1421
  %v1430 = vsel %vm1216, %v1422, 0.0
  %v1431 = vadd.f32 %v1429, %v1430
  %v1432 = vrot.slane %v1431, 4
  %v1433 = vadd.f32 %v1431, %v1432
  %v1434 = vrot.slane %v1433, 2
  %v1435 = vadd.f32 %v1433, %v1434
  %v1436 = vrot.slane %v1435, 1
  %v1437 = vadd.f32 %v1435, %v1436
  %v1438 = vmul.f32 %v1416, %v1416
  %v1439 = vmul.f32 %v1417, %v1417
  %v1440 = vmul.f32 %v1418, %v1418
  %v1441 = vmul.f32 %v1419, %v1419
  %v1442 = vmul.f32 %v1420, %v1420
  %v1443 = vmul.f32 %v1421, %v1421
  %v1444 = vmul.f32 %v1422, %v1422
  %v1445 = vadd.f32 %v1438, %v1439
  %v1446 = vadd.f32 %v1445, %v1440
  %v1447 = vadd.f32 %v1446, %v1441
  %v1448 = vadd.f32 %v1447, %v1442
  %v1449 = vadd.f32 %v1448, %v1443
  %v1450 = vsel %vm1216, %v1444, 0.0
  %v1451 = vadd.f32 %v1449, %v1450
  %v1452 = vrot.slane %v1451, 4
  %v1453 = vadd.f32 %v1451, %v1452
  %v1454 = vrot.slane %v1453, 2
  %v1455 = vadd.f32 %v1453, %v1454
  %v1456 = vrot.slane %v1455, 1
  %v1457 = vadd.f32 %v1455, %v1456
  %v1458 = vmul.f32 %v1437, 0.020408163
  %v1459 = vmul.f32 %v1457, 0.020408163
  %v1460 = vmul.f32 %v1458, %v1458
  %v1461 = vsub.f32 %v1459, %v1460
  %v1462 = vadd.f32 %v1461, 1e-05
  %v1463 = vrsqrt.pop %v1462
  %v1464 = vmul.f32 %v1423, %v1463
  %v1465 = vmul.f32 %v1458, %v1464
  %v1466 = vsub.f32 %v1424, %v1465
  %v1468 = vlaneseq
  %v1469 = vshrl.u32 %v1468, 7
  %v1470 = vsub.s32 0, %v1469
  %v1471 = vrot.slane %v1464, %v1470
  %v1473 = vmul.f32 %v1416, %v1471
  %v1474 = vmul.f32 %v1417, %v1471
  %v1475 = vmul.f32 %v1418, %v1471
  %v1476 = vmul.f32 %v1419, %v1471
  %v1477 = vmul.f32 %v1420, %v1471
  %v1478 = vmul.f32 %v1421, %v1471
  %v1479 = vmul.f32 %v1422, %v1471
  %v1481 = vlaneseq
  %v1482 = vshrl.u32 %v1481, 7
  %v1483 = vsub.s32 0, %v1482
  %v1484 = vrot.slane %v1466, %v1483
  %v1486 = vadd.f32 %v1473, %v1484
  %v1487 = vadd.f32 %v1474, %v1484
  %v1488 = vadd.f32 %v1475, %v1484
  %v1489 = vadd.f32 %v1476, %v1484
  %v1490 = vadd.f32 %v1477, %v1484
  %v1491 = vadd.f32 %v1478, %v1484
  %v1492 = vadd.f32 %v1479, %v1484
  %1493 = vst [vmem:[%s6 + $0x38] sm:$0xff] %v1486
  %1494 = vst [vmem:[%s6 + $0x88] sm:$0xff] %v1487
  %1495 = vst [vmem:[%s6 + $0xd8] sm:$0xff] %v1488
  %1496 = vst [vmem:[%s6 + $0x128] sm:$0xff] %v1489
  %1497 = vst [vmem:[%s6 + $0x178] sm:$0xff] %v1490
  %1498 = vst [vmem:[%s6 + $0x1c8] sm:$0xff] %v1491
  %1499 = vst [vmem:[%s6 + $0x218] sm:$0x1] %v1492
  %s1500 = scalar_lea.vmem %s3, 392
  %v1501 = vld [vmem:[%s1500] sm:$0xff]
  %v1502 = vld [vmem:[%s1500 + $0x8] sm:$0xff]
  %v1503 = vld [vmem:[%s1500 + $0x10] sm:$0xff]
  %v1504 = vld [vmem:[%s1500 + $0x18] sm:$0xff]
  %v1505 = vld [vmem:[%s1500 + $0x20] sm:$0xff]
  %v1506 = vld [vmem:[%s1500 + $0x28] sm:$0xff]
  %v1507 = vld [vmem:[%s1500 + $0x30] sm:$0x1]
  %v1508 = vld [vmem:[%s4 + $0x9] sm:$0x1]
  %v1509 = vld [vmem:[%s5 + $0x9] sm:$0x1]
  %v1510 = vsel %vm1185, %v1501, 0.0
  %v1511 = vsel %vm1185, %v1502, 0.0
  %v1512 = vadd.f32 %v1510, %v1511
  %v1513 = vsel %vm1185, %v1503, 0.0
  %v1514 = vadd.f32 %v1512, %v1513
  %v1515 = vsel %vm1185, %v1504, 0.0
  %v1516 = vadd.f32 %v1514, %v1515
  %v1517 = vsel %vm1185, %v1505, 0.0
  %v1518 = vadd.f32 %v1516, %v1517
  %v1519 = vsel %vm1185, %v1506, 0.0
  %v1520 = vadd.f32 %v1518, %v1519
  %vm1521 = vcmask 253952
  %v1522 = vsel %vm1521, %v1507, 0.0
  %v1523 = vadd.f32 %v1520, %v1522
  %v1524 = vrot.slane %v1523, 4
  %v1525 = vadd.f32 %v1523, %v1524
  %v1526 = vrot.slane %v1525, 2
  %v1527 = vadd.f32 %v1525, %v1526
  %v1528 = vrot.slane %v1527, 1
  %v1529 = vadd.f32 %v1527, %v1528
  %v1530 = vmul.f32 %v1501, %v1501
  %v1531 = vmul.f32 %v1502, %v1502
  %v1532 = vmul.f32 %v1503, %v1503
  %v1533 = vmul.f32 %v1504, %v1504
  %v1534 = vmul.f32 %v1505, %v1505
  %v1535 = vmul.f32 %v1506, %v1506
  %v1536 = vmul.f32 %v1507, %v1507
  %v1537 = vsel %vm1185, %v1530, 0.0
  %v1538 = vsel %vm1185, %v1531, 0.0
  %v1539 = vadd.f32 %v1537, %v1538
  %v1540 = vsel %vm1185, %v1532, 0.0
  %v1541 = vadd.f32 %v1539, %v1540
  %v1542 = vsel %vm1185, %v1533, 0.0
  %v1543 = vadd.f32 %v1541, %v1542
  %v1544 = vsel %vm1185, %v1534, 0.0
  %v1545 = vadd.f32 %v1543, %v1544
  %v1546 = vsel %vm1185, %v1535, 0.0
  %v1547 = vadd.f32 %v1545, %v1546
  %v1548 = vsel %vm1521, %v1536, 0.0
  %v1549 = vadd.f32 %v1547, %v1548
  %v1550 = vrot.slane %v1549, 4
  %v1551 = vadd.f32 %v1549, %v1550
  %v1552 = vrot.slane %v1551, 2
  %v1553 = vadd.f32 %v1551, %v1552
  %v1554 = vrot.slane %v1553, 1
  %v1555 = vadd.f32 %v1553, %v1554
  %v1556 = vmul.f32 %v1529, 0.020408163
  %v1557 = vmul.f32 %v1555, 0.020408163
  %v1558 = vmul.f32 %v1556, %v1556
  %v1559 = vsub.f32 %v1557, %v1558
  %v1560 = vadd.f32 %v1559, 1e-05
  %v1561 = vrsqrt.pop %v1560
  %v1562 = vmul.f32 %v1508, %v1561
  %v1563 = vmul.f32 %v1556, %v1562
  %v1564 = vsub.f32 %v1509, %v1563
  %v1566 = vlaneseq
  %v1567 = vshrl.u32 %v1566, 7
  %v1568 = vsub.s32 0, %v1567
  %v1569 = vrot.slane %v1562, %v1568
  %v1571 = vmul.f32 %v1501, %v1569
  %v1572 = vmul.f32 %v1502, %v1569
  %v1573 = vmul.f32 %v1503, %v1569
  %v1574 = vmul.f32 %v1504, %v1569
  %v1575 = vmul.f32 %v1505, %v1569
  %v1576 = vmul.f32 %v1506, %v1569
  %v1577 = vmul.f32 %v1507, %v1569
  %v1579 = vlaneseq
  %v1580 = vshrl.u32 %v1579, 7
  %v1581 = vsub.s32 0, %v1580
  %v1582 = vrot.slane %v1564, %v1581
  %v1584 = vadd.f32 %v1571, %v1582
  %v1585 = vadd.f32 %v1572, %v1582
  %v1586 = vadd.f32 %v1573, %v1582
  %v1587 = vadd.f32 %v1574, %v1582
  %v1588 = vadd.f32 %v1575, %v1582
  %v1589 = vadd.f32 %v1576, %v1582
  %v1590 = vadd.f32 %v1577, %v1582
  %1591 = vst.msk [vmem:[%s6 + $0x48] sm:$0xff] %vm1185, %v1584
  %1592 = vst.msk [vmem:[%s6 + $0x98] sm:$0xff] %vm1185, %v1585
  %1593 = vst.msk [vmem:[%s6 + $0xe8] sm:$0xff] %vm1185, %v1586
  %1594 = vst.msk [vmem:[%s6 + $0x138] sm:$0xff] %vm1185, %v1587
  %1595 = vst.msk [vmem:[%s6 + $0x188] sm:$0xff] %vm1185, %v1588
  %1596 = vst.msk [vmem:[%s6 + $0x1d8] sm:$0xff] %vm1185, %v1589
  %1597 = vst.msk [vmem:[%s6 + $0x228] sm:$0x1] %vm1521, %v1590
  %v1598 = vld [vmem:[%s2] sm:$0xff]
  %v1599 = vld [vmem:[%s2 + $0x38] sm:$0xff]
  %v1600 = vld [vmem:[%s2 + $0x70] sm:$0xff]
  %v1601 = vld [vmem:[%s2 + $0xa8] sm:$0xff]
  %v1602 = vld [vmem:[%s2 + $0xe0] sm:$0xff]
  %v1603 = vld [vmem:[%s2 + $0x118] sm:$0xff]
  %v1604 = vld [vmem:[%s2 + $0x150] sm:$0x1]
  %v1605 = vld [vmem:[%s4] sm:$0x1]
  %v1606 = vld [vmem:[%s5] sm:$0x1]
  %v1607 = vadd.f32 %v1598, %v1599
  %v1608 = vadd.f32 %v1607, %v1600
  %v1609 = vadd.f32 %v1608, %v1601
  %v1610 = vadd.f32 %v1609, %v1602
  %v1611 = vadd.f32 %v1610, %v1603
  %v1612 = vsel %vm1216, %v1604, 0.0
  %v1613 = vadd.f32 %v1611, %v1612
  %v1614 = vrot.slane %v1613, 4
  %v1615 = vadd.f32 %v1613, %v1614
  %v1616 = vrot.slane %v1615, 2
  %v1617 = vadd.f32 %v1615, %v1616
  %v1618 = vrot.slane %v1617, 1
  %v1619 = vadd.f32 %v1617, %v1618
  %v1620 = vmul.f32 %v1598, %v1598
  %v1621 = vmul.f32 %v1599, %v1599
  %v1622 = vmul.f32 %v1600, %v1600
  %v1623 = vmul.f32 %v1601, %v1601
  %v1624 = vmul.f32 %v1602, %v1602
  %v1625 = vmul.f32 %v1603, %v1603
  %v1626 = vmul.f32 %v1604, %v1604
  %v1627 = vadd.f32 %v1620, %v1621
  %v1628 = vadd.f32 %v1627, %v1622
  %v1629 = vadd.f32 %v1628, %v1623
  %v1630 = vadd.f32 %v1629, %v1624
  %v1631 = vadd.f32 %v1630, %v1625
  %v1632 = vsel %vm1216, %v1626, 0.0
  %v1633 = vadd.f32 %v1631, %v1632
  %v1634 = vrot.slane %v1633, 4
  %v1635 = vadd.f32 %v1633, %v1634
  %v1636 = vrot.slane %v1635, 2
  %v1637 = vadd.f32 %v1635, %v1636
  %v1638 = vrot.slane %v1637, 1
  %v1639 = vadd.f32 %v1637, %v1638
  %v1640 = vmul.f32 %v1619, 0.020408163
  %v1641 = vmul.f32 %v1639, 0.020408163
  %v1642 = vmul.f32 %v1640, %v1640
  %v1643 = vsub.f32 %v1641, %v1642
  %v1644 = vadd.f32 %v1643, 1e-05
  %v1645 = vrsqrt.pop %v1644
  %v1646 = vmul.f32 %v1605, %v1645
  %v1647 = vmul.f32 %v1640, %v1646
  %v1648 = vsub.f32 %v1606, %v1647
  %v1650 = vlaneseq
  %v1651 = vshrl.u32 %v1650, 7
  %v1652 = vsub.s32 0, %v1651
  %v1653 = vrot.slane %v1646, %v1652
  %v1655 = vmul.f32 %v1598, %v1653
  %v1656 = vmul.f32 %v1599, %v1653
  %v1657 = vmul.f32 %v1600, %v1653
  %v1658 = vmul.f32 %v1601, %v1653
  %v1659 = vmul.f32 %v1602, %v1653
  %v1660 = vmul.f32 %v1603, %v1653
  %v1661 = vmul.f32 %v1604, %v1653
  %v1663 = vlaneseq
  %v1664 = vshrl.u32 %v1663, 7
  %v1665 = vsub.s32 0, %v1664
  %v1666 = vrot.slane %v1648, %v1665
  %v1668 = vadd.f32 %v1655, %v1666
  %v1669 = vadd.f32 %v1656, %v1666
  %v1670 = vadd.f32 %v1657, %v1666
  %v1671 = vadd.f32 %v1658, %v1666
  %v1672 = vadd.f32 %v1659, %v1666
  %v1673 = vadd.f32 %v1660, %v1666
  %v1674 = vadd.f32 %v1661, %v1666
  %1675 = vst [vmem:[%s6] sm:$0xff] %v1668
  %1676 = vst [vmem:[%s6 + $0x50] sm:$0xff] %v1669
  %1677 = vst [vmem:[%s6 + $0xa0] sm:$0xff] %v1670
  %1678 = vst [vmem:[%s6 + $0xf0] sm:$0xff] %v1671
  %1679 = vst [vmem:[%s6 + $0x140] sm:$0xff] %v1672
  %1680 = vst [vmem:[%s6 + $0x190] sm:$0xff] %v1673
  %1681 = vst [vmem:[%s6 + $0x1e0] sm:$0x1] %v1674
  %v1682 = vld [vmem:[%s2 + $0x8] sm:$0xff]
  %v1683 = vld [vmem:[%s2 + $0x40] sm:$0xff]
  %v1684 = vld [vmem:[%s2 + $0x78] sm:$0xff]
  %v1685 = vld [vmem:[%s2 + $0xb0] sm:$0xff]
  %v1686 = vld [vmem:[%s2 + $0xe8] sm:$0xff]
  %v1687 = vld [vmem:[%s2 + $0x120] sm:$0xff]
  %v1688 = vld [vmem:[%s2 + $0x158] sm:$0x1]
  %v1689 = vld [vmem:[%s4 + $0x1] sm:$0x1]
  %v1690 = vld [vmem:[%s5 + $0x1] sm:$0x1]
  %v1691 = vadd.f32 %v1682, %v1683
  %v1692 = vadd.f32 %v1691, %v1684
  %v1693 = vadd.f32 %v1692, %v1685
  %v1694 = vadd.f32 %v1693, %v1686
  %v1695 = vadd.f32 %v1694, %v1687
  %v1696 = vsel %vm1216, %v1688, 0.0
  %v1697 = vadd.f32 %v1695, %v1696
  %v1698 = vrot.slane %v1697, 4
  %v1699 = vadd.f32 %v1697, %v1698
  %v1700 = vrot.slane %v1699, 2
  %v1701 = vadd.f32 %v1699, %v1700
  %v1702 = vrot.slane %v1701, 1
  %v1703 = vadd.f32 %v1701, %v1702
  %v1704 = vmul.f32 %v1682, %v1682
  %v1705 = vmul.f32 %v1683, %v1683
  %v1706 = vmul.f32 %v1684, %v1684
  %v1707 = vmul.f32 %v1685, %v1685
  %v1708 = vmul.f32 %v1686, %v1686
  %v1709 = vmul.f32 %v1687, %v1687
  %v1710 = vmul.f32 %v1688, %v1688
  %v1711 = vadd.f32 %v1704, %v1705
  %v1712 = vadd.f32 %v1711, %v1706
  %v1713 = vadd.f32 %v1712, %v1707
  %v1714 = vadd.f32 %v1713, %v1708
  %v1715 = vadd.f32 %v1714, %v1709
  %v1716 = vsel %vm1216, %v1710, 0.0
  %v1717 = vadd.f32 %v1715, %v1716
  %v1718 = vrot.slane %v1717, 4
  %v1719 = vadd.f32 %v1717, %v1718
  %v1720 = vrot.slane %v1719, 2
  %v1721 = vadd.f32 %v1719, %v1720
  %v1722 = vrot.slane %v1721, 1
  %v1723 = vadd.f32 %v1721, %v1722
  %v1724 = vmul.f32 %v1703, 0.020408163
  %v1725 = vmul.f32 %v1723, 0.020408163
  %v1726 = vmul.f32 %v1724, %v1724
  %v1727 = vsub.f32 %v1725, %v1726
  %v1728 = vadd.f32 %v1727, 1e-05
  %v1729 = vrsqrt.pop %v1728
  %v1730 = vmul.f32 %v1689, %v1729
  %v1731 = vmul.f32 %v1724, %v1730
  %v1732 = vsub.f32 %v1690, %v1731
  %v1734 = vlaneseq
  %v1735 = vshrl.u32 %v1734, 7
  %v1736 = vsub.s32 0, %v1735
  %v1737 = vrot.slane %v1730, %v1736
  %v1739 = vmul.f32 %v1682, %v1737
  %v1740 = vmul.f32 %v1683, %v1737
  %v1741 = vmul.f32 %v1684, %v1737
  %v1742 = vmul.f32 %v1685, %v1737
  %v1743 = vmul.f32 %v1686, %v1737
  %v1744 = vmul.f32 %v1687, %v1737
  %v1745 = vmul.f32 %v1688, %v1737
  %v1747 = vlaneseq
  %v1748 = vshrl.u32 %v1747, 7
  %v1749 = vsub.s32 0, %v1748
  %v1750 = vrot.slane %v1732, %v1749
  %v1752 = vadd.f32 %v1739, %v1750
  %v1753 = vadd.f32 %v1740, %v1750
  %v1754 = vadd.f32 %v1741, %v1750
  %v1755 = vadd.f32 %v1742, %v1750
  %v1756 = vadd.f32 %v1743, %v1750
  %v1757 = vadd.f32 %v1744, %v1750
  %v1758 = vadd.f32 %v1745, %v1750
  %1759 = vst [vmem:[%s6 + $0x8] sm:$0xff] %v1752
  %1760 = vst [vmem:[%s6 + $0x58] sm:$0xff] %v1753
  %1761 = vst [vmem:[%s6 + $0xa8] sm:$0xff] %v1754
  %1762 = vst [vmem:[%s6 + $0xf8] sm:$0xff] %v1755
  %1763 = vst [vmem:[%s6 + $0x148] sm:$0xff] %v1756
  %1764 = vst [vmem:[%s6 + $0x198] sm:$0xff] %v1757
  %1765 = vst [vmem:[%s6 + $0x1e8] sm:$0x1] %v1758
  %v1766 = vld [vmem:[%s2 + $0x10] sm:$0xff]
  %v1767 = vld [vmem:[%s2 + $0x48] sm:$0xff]
  %v1768 = vld [vmem:[%s2 + $0x80] sm:$0xff]
  %v1769 = vld [vmem:[%s2 + $0xb8] sm:$0xff]
  %v1770 = vld [vmem:[%s2 + $0xf0] sm:$0xff]
  %v1771 = vld [vmem:[%s2 + $0x128] sm:$0xff]
  %v1772 = vld [vmem:[%s2 + $0x160] sm:$0x1]
  %v1773 = vld [vmem:[%s4 + $0x2] sm:$0x1]
  %v1774 = vld [vmem:[%s5 + $0x2] sm:$0x1]
  %v1775 = vadd.f32 %v1766, %v1767
  %v1776 = vadd.f32 %v1775, %v1768
  %v1777 = vadd.f32 %v1776, %v1769
  %v1778 = vadd.f32 %v1777, %v1770
  %v1779 = vadd.f32 %v1778, %v1771
  %v1780 = vsel %vm1216, %v1772, 0.0
  %v1781 = vadd.f32 %v1779, %v1780
  %v1782 = vrot.slane %v1781, 4
  %v1783 = vadd.f32 %v1781, %v1782
  %v1784 = vrot.slane %v1783, 2
  %v1785 = vadd.f32 %v1783, %v1784
  %v1786 = vrot.slane %v1785, 1
  %v1787 = vadd.f32 %v1785, %v1786
  %v1788 = vmul.f32 %v1766, %v1766
  %v1789 = vmul.f32 %v1767, %v1767
  %v1790 = vmul.f32 %v1768, %v1768
  %v1791 = vmul.f32 %v1769, %v1769
  %v1792 = vmul.f32 %v1770, %v1770
  %v1793 = vmul.f32 %v1771, %v1771
  %v1794 = vmul.f32 %v1772, %v1772
  %v1795 = vadd.f32 %v1788, %v1789
  %v1796 = vadd.f32 %v1795, %v1790
  %v1797 = vadd.f32 %v1796, %v1791
  %v1798 = vadd.f32 %v1797, %v1792
  %v1799 = vadd.f32 %v1798, %v1793
  %v1800 = vsel %vm1216, %v1794, 0.0
  %v1801 = vadd.f32 %v1799, %v1800
  %v1802 = vrot.slane %v1801, 4
  %v1803 = vadd.f32 %v1801, %v1802
  %v1804 = vrot.slane %v1803, 2
  %v1805 = vadd.f32 %v1803, %v1804
  %v1806 = vrot.slane %v1805, 1
  %v1807 = vadd.f32 %v1805, %v1806
  %v1808 = vmul.f32 %v1787, 0.020408163
  %v1809 = vmul.f32 %v1807, 0.020408163
  %v1810 = vmul.f32 %v1808, %v1808
  %v1811 = vsub.f32 %v1809, %v1810
  %v1812 = vadd.f32 %v1811, 1e-05
  %v1813 = vrsqrt.pop %v1812
  %v1814 = vmul.f32 %v1773, %v1813
  %v1815 = vmul.f32 %v1808, %v1814
  %v1816 = vsub.f32 %v1774, %v1815
  %v1818 = vlaneseq
  %v1819 = vshrl.u32 %v1818, 7
  %v1820 = vsub.s32 0, %v1819
  %v1821 = vrot.slane %v1814, %v1820
  %v1823 = vmul.f32 %v1766, %v1821
  %v1824 = vmul.f32 %v1767, %v1821
  %v1825 = vmul.f32 %v1768, %v1821
  %v1826 = vmul.f32 %v1769, %v1821
  %v1827 = vmul.f32 %v1770, %v1821
  %v1828 = vmul.f32 %v1771, %v1821
  %v1829 = vmul.f32 %v1772, %v1821
  %v1831 = vlaneseq
  %v1832 = vshrl.u32 %v1831, 7
  %v1833 = vsub.s32 0, %v1832
  %v1834 = vrot.slane %v1816, %v1833
  %v1836 = vadd.f32 %v1823, %v1834
  %v1837 = vadd.f32 %v1824, %v1834
  %v1838 = vadd.f32 %v1825, %v1834
  %v1839 = vadd.f32 %v1826, %v1834
  %v1840 = vadd.f32 %v1827, %v1834
  %v1841 = vadd.f32 %v1828, %v1834
  %v1842 = vadd.f32 %v1829, %v1834
  %1843 = vst [vmem:[%s6 + $0x10] sm:$0xff] %v1836
  %1844 = vst [vmem:[%s6 + $0x60] sm:$0xff] %v1837
  %1845 = vst [vmem:[%s6 + $0xb0] sm:$0xff] %v1838
  %1846 = vst [vmem:[%s6 + $0x100] sm:$0xff] %v1839
  %1847 = vst [vmem:[%s6 + $0x150] sm:$0xff] %v1840
  %1848 = vst [vmem:[%s6 + $0x1a0] sm:$0xff] %v1841
  %1849 = vst [vmem:[%s6 + $0x1f0] sm:$0x1] %v1842
  %v1850 = vld [vmem:[%s2 + $0x18] sm:$0xff]
  %v1851 = vld [vmem:[%s2 + $0x50] sm:$0xff]
  %v1852 = vld [vmem:[%s2 + $0x88] sm:$0xff]
  %v1853 = vld [vmem:[%s2 + $0xc0] sm:$0xff]
  %v1854 = vld [vmem:[%s2 + $0xf8] sm:$0xff]
  %v1855 = vld [vmem:[%s2 + $0x130] sm:$0xff]
  %v1856 = vld [vmem:[%s2 + $0x168] sm:$0x1]
  %v1857 = vld [vmem:[%s4 + $0x3] sm:$0x1]
  %v1858 = vld [vmem:[%s5 + $0x3] sm:$0x1]
  %v1859 = vadd.f32 %v1850, %v1851
  %v1860 = vadd.f32 %v1859, %v1852
  %v1861 = vadd.f32 %v1860, %v1853
  %v1862 = vadd.f32 %v1861, %v1854
  %v1863 = vadd.f32 %v1862, %v1855
  %v1864 = vsel %vm1216, %v1856, 0.0
  %v1865 = vadd.f32 %v1863, %v1864
  %v1866 = vrot.slane %v1865, 4
  %v1867 = vadd.f32 %v1865, %v1866
  %v1868 = vrot.slane %v1867, 2
  %v1869 = vadd.f32 %v1867, %v1868
  %v1870 = vrot.slane %v1869, 1
  %v1871 = vadd.f32 %v1869, %v1870
  %v1872 = vmul.f32 %v1850, %v1850
  %v1873 = vmul.f32 %v1851, %v1851
  %v1874 = vmul.f32 %v1852, %v1852
  %v1875 = vmul.f32 %v1853, %v1853
  %v1876 = vmul.f32 %v1854, %v1854
  %v1877 = vmul.f32 %v1855, %v1855
  %v1878 = vmul.f32 %v1856, %v1856
  %v1879 = vadd.f32 %v1872, %v1873
  %v1880 = vadd.f32 %v1879, %v1874
  %v1881 = vadd.f32 %v1880, %v1875
  %v1882 = vadd.f32 %v1881, %v1876
  %v1883 = vadd.f32 %v1882, %v1877
  %v1884 = vsel %vm1216, %v1878, 0.0
  %v1885 = vadd.f32 %v1883, %v1884
  %v1886 = vrot.slane %v1885, 4
  %v1887 = vadd.f32 %v1885, %v1886
  %v1888 = vrot.slane %v1887, 2
  %v1889 = vadd.f32 %v1887, %v1888
  %v1890 = vrot.slane %v1889, 1
  %v1891 = vadd.f32 %v1889, %v1890
  %v1892 = vmul.f32 %v1871, 0.020408163
  %v1893 = vmul.f32 %v1891, 0.020408163
  %v1894 = vmul.f32 %v1892, %v1892
  %v1895 = vsub.f32 %v1893, %v1894
  %v1896 = vadd.f32 %v1895, 1e-05
  %v1897 = vrsqrt.pop %v1896
  %v1898 = vmul.f32 %v1857, %v1897
  %v1899 = vmul.f32 %v1892, %v1898
  %v1900 = vsub.f32 %v1858, %v1899
  %v1902 = vlaneseq
  %v1903 = vshrl.u32 %v1902, 7
  %v1904 = vsub.s32 0, %v1903
  %v1905 = vrot.slane %v1898, %v1904
  %v1907 = vmul.f32 %v1850, %v1905
  %v1908 = vmul.f32 %v1851, %v1905
  %v1909 = vmul.f32 %v1852, %v1905
  %v1910 = vmul.f32 %v1853, %v1905
  %v1911 = vmul.f32 %v1854, %v1905
  %v1912 = vmul.f32 %v1855, %v1905
  %v1913 = vmul.f32 %v1856, %v1905
  %v1915 = vlaneseq
  %v1916 = vshrl.u32 %v1915, 7
  %v1917 = vsub.s32 0, %v1916
  %v1918 = vrot.slane %v1900, %v1917
  %v1920 = vadd.f32 %v1907, %v1918
  %v1921 = vadd.f32 %v1908, %v1918
  %v1922 = vadd.f32 %v1909, %v1918
  %v1923 = vadd.f32 %v1910, %v1918
  %v1924 = vadd.f32 %v1911, %v1918
  %v1925 = vadd.f32 %v1912, %v1918
  %v1926 = vadd.f32 %v1913, %v1918
  %1927 = vst [vmem:[%s6 + $0x18] sm:$0xff] %v1920
  %1928 = vst [vmem:[%s6 + $0x68] sm:$0xff] %v1921
  %1929 = vst [vmem:[%s6 + $0xb8] sm:$0xff] %v1922
  %1930 = vst [vmem:[%s6 + $0x108] sm:$0xff] %v1923
  %1931 = vst [vmem:[%s6 + $0x158] sm:$0xff] %v1924
  %1932 = vst [vmem:[%s6 + $0x1a8] sm:$0xff] %v1925
  %1933 = vst [vmem:[%s6 + $0x1f8] sm:$0x1] %v1926
  %v1934 = vld [vmem:[%s2 + $0x20] sm:$0xff]
  %v1935 = vld [vmem:[%s2 + $0x58] sm:$0xff]
  %v1936 = vld [vmem:[%s2 + $0x90] sm:$0xff]
  %v1937 = vld [vmem:[%s2 + $0xc8] sm:$0xff]
  %v1938 = vld [vmem:[%s2 + $0x100] sm:$0xff]
  %v1939 = vld [vmem:[%s2 + $0x138] sm:$0xff]
  %v1940 = vld [vmem:[%s2 + $0x170] sm:$0x1]
  %v1941 = vld [vmem:[%s4 + $0x4] sm:$0x1]
  %v1942 = vld [vmem:[%s5 + $0x4] sm:$0x1]
  %v1943 = vadd.f32 %v1934, %v1935
  %v1944 = vadd.f32 %v1943, %v1936
  %v1945 = vadd.f32 %v1944, %v1937
  %v1946 = vadd.f32 %v1945, %v1938
  %v1947 = vadd.f32 %v1946, %v1939
  %v1948 = vsel %vm1216, %v1940, 0.0
  %v1949 = vadd.f32 %v1947, %v1948
  %v1950 = vrot.slane %v1949, 4
  %v1951 = vadd.f32 %v1949, %v1950
  %v1952 = vrot.slane %v1951, 2
  %v1953 = vadd.f32 %v1951, %v1952
  %v1954 = vrot.slane %v1953, 1
  %v1955 = vadd.f32 %v1953, %v1954
  %v1956 = vmul.f32 %v1934, %v1934
  %v1957 = vmul.f32 %v1935, %v1935
  %v1958 = vmul.f32 %v1936, %v1936
  %v1959 = vmul.f32 %v1937, %v1937
  %v1960 = vmul.f32 %v1938, %v1938
  %v1961 = vmul.f32 %v1939, %v1939
  %v1962 = vmul.f32 %v1940, %v1940
  %v1963 = vadd.f32 %v1956, %v1957
  %v1964 = vadd.f32 %v1963, %v1958
  %v1965 = vadd.f32 %v1964, %v1959
  %v1966 = vadd.f32 %v1965, %v1960
  %v1967 = vadd.f32 %v1966, %v1961
  %v1968 = vsel %vm1216, %v1962, 0.0
  %v1969 = vadd.f32 %v1967, %v1968
  %v1970 = vrot.slane %v1969, 4
  %v1971 = vadd.f32 %v1969, %v1970
  %v1972 = vrot.slane %v1971, 2
  %v1973 = vadd.f32 %v1971, %v1972
  %v1974 = vrot.slane %v1973, 1
  %v1975 = vadd.f32 %v1973, %v1974
  %v1976 = vmul.f32 %v1955, 0.020408163
  %v1977 = vmul.f32 %v1975, 0.020408163
  %v1978 = vmul.f32 %v1976, %v1976
  %v1979 = vsub.f32 %v1977, %v1978
  %v1980 = vadd.f32 %v1979, 1e-05
  %v1981 = vrsqrt.pop %v1980
  %v1982 = vmul.f32 %v1941, %v1981
  %v1983 = vmul.f32 %v1976, %v1982
  %v1984 = vsub.f32 %v1942, %v1983
  %v1986 = vlaneseq
  %v1987 = vshrl.u32 %v1986, 7
  %v1988 = vsub.s32 0, %v1987
  %v1989 = vrot.slane %v1982, %v1988
  %v1991 = vmul.f32 %v1934, %v1989
  %v1992 = vmul.f32 %v1935, %v1989
  %v1993 = vmul.f32 %v1936, %v1989
  %v1994 = vmul.f32 %v1937, %v1989
  %v1995 = vmul.f32 %v1938, %v1989
  %v1996 = vmul.f32 %v1939, %v1989
  %v1997 = vmul.f32 %v1940, %v1989
  %v1999 = vlaneseq
  %v2000 = vshrl.u32 %v1999, 7
  %v2001 = vsub.s32 0, %v2000
  %v2002 = vrot.slane %v1984, %v2001
  %v2004 = vadd.f32 %v1991, %v2002
  %v2005 = vadd.f32 %v1992, %v2002
  %v2006 = vadd.f32 %v1993, %v2002
  %v2007 = vadd.f32 %v1994, %v2002
  %v2008 = vadd.f32 %v1995, %v2002
  %v2009 = vadd.f32 %v1996, %v2002
  %v2010 = vadd.f32 %v1997, %v2002
  %2011 = vst [vmem:[%s6 + $0x20] sm:$0xff] %v2004
  %2012 = vst [vmem:[%s6 + $0x70] sm:$0xff] %v2005
  %2013 = vst [vmem:[%s6 + $0xc0] sm:$0xff] %v2006
  %2014 = vst [vmem:[%s6 + $0x110] sm:$0xff] %v2007
  %2015 = vst [vmem:[%s6 + $0x160] sm:$0xff] %v2008
  %2016 = vst [vmem:[%s6 + $0x1b0] sm:$0xff] %v2009
  %2017 = vst [vmem:[%s6 + $0x200] sm:$0x1] %v2010
  %v2018 = vld [vmem:[%s2 + $0x28] sm:$0xff]
  %v2019 = vld [vmem:[%s2 + $0x60] sm:$0xff]
  %v2020 = vld [vmem:[%s2 + $0x98] sm:$0xff]
  %v2021 = vld [vmem:[%s2 + $0xd0] sm:$0xff]
  %v2022 = vld [vmem:[%s2 + $0x108] sm:$0xff]
  %v2023 = vld [vmem:[%s2 + $0x140] sm:$0xff]
  %v2024 = vld [vmem:[%s2 + $0x178] sm:$0x1]
  %v2025 = vld [vmem:[%s4 + $0x5] sm:$0x1]
  %v2026 = vld [vmem:[%s5 + $0x5] sm:$0x1]
  %v2027 = vadd.f32 %v2018, %v2019
  %v2028 = vadd.f32 %v2027, %v2020
  %v2029 = vadd.f32 %v2028, %v2021
  %v2030 = vadd.f32 %v2029, %v2022
  %v2031 = vadd.f32 %v2030, %v2023
  %v2032 = vsel %vm1216, %v2024, 0.0
  %v2033 = vadd.f32 %v2031, %v2032
  %v2034 = vrot.slane %v2033, 4
  %v2035 = vadd.f32 %v2033, %v2034
  %v2036 = vrot.slane %v2035, 2
  %v2037 = vadd.f32 %v2035, %v2036
  %v2038 = vrot.slane %v2037, 1
  %v2039 = vadd.f32 %v2037, %v2038
  %v2040 = vmul.f32 %v2018, %v2018
  %v2041 = vmul.f32 %v2019, %v2019
  %v2042 = vmul.f32 %v2020, %v2020
  %v2043 = vmul.f32 %v2021, %v2021
  %v2044 = vmul.f32 %v2022, %v2022
  %v2045 = vmul.f32 %v2023, %v2023
  %v2046 = vmul.f32 %v2024, %v2024
  %v2047 = vadd.f32 %v2040, %v2041
  %v2048 = vadd.f32 %v2047, %v2042
  %v2049 = vadd.f32 %v2048, %v2043
  %v2050 = vadd.f32 %v2049, %v2044
  %v2051 = vadd.f32 %v2050, %v2045
  %v2052 = vsel %vm1216, %v2046, 0.0
  %v2053 = vadd.f32 %v2051, %v2052
  %v2054 = vrot.slane %v2053, 4
  %v2055 = vadd.f32 %v2053, %v2054
  %v2056 = vrot.slane %v2055, 2
  %v2057 = vadd.f32 %v2055, %v2056
  %v2058 = vrot.slane %v2057, 1
  %v2059 = vadd.f32 %v2057, %v2058
  %v2060 = vmul.f32 %v2039, 0.020408163
  %v2061 = vmul.f32 %v2059, 0.020408163
  %v2062 = vmul.f32 %v2060, %v2060
  %v2063 = vsub.f32 %v2061, %v2062
  %v2064 = vadd.f32 %v2063, 1e-05
  %v2065 = vrsqrt.pop %v2064
  %v2066 = vmul.f32 %v2025, %v2065
  %v2067 = vmul.f32 %v2060, %v2066
  %v2068 = vsub.f32 %v2026, %v2067
  %v2070 = vlaneseq
  %v2071 = vshrl.u32 %v2070, 7
  %v2072 = vsub.s32 0, %v2071
  %v2073 = vrot.slane %v2066, %v2072
  %v2075 = vmul.f32 %v2018, %v2073
  %v2076 = vmul.f32 %v2019, %v2073
  %v2077 = vmul.f32 %v2020, %v2073
  %v2078 = vmul.f32 %v2021, %v2073
  %v2079 = vmul.f32 %v2022, %v2073
  %v2080 = vmul.f32 %v2023, %v2073
  %v2081 = vmul.f32 %v2024, %v2073
  %v2083 = vlaneseq
  %v2084 = vshrl.u32 %v2083, 7
  %v2085 = vsub.s32 0, %v2084
  %v2086 = vrot.slane %v2068, %v2085
  %v2088 = vadd.f32 %v2075, %v2086
  %v2089 = vadd.f32 %v2076, %v2086
  %v2090 = vadd.f32 %v2077, %v2086
  %v2091 = vadd.f32 %v2078, %v2086
  %v2092 = vadd.f32 %v2079, %v2086
  %v2093 = vadd.f32 %v2080, %v2086
  %v2094 = vadd.f32 %v2081, %v2086
  %2095 = vst [vmem:[%s6 + $0x28] sm:$0xff] %v2088
  %2096 = vst [vmem:[%s6 + $0x78] sm:$0xff] %v2089
  %2097 = vst [vmem:[%s6 + $0xc8] sm:$0xff] %v2090
  %2098 = vst [vmem:[%s6 + $0x118] sm:$0xff] %v2091
  %2099 = vst [vmem:[%s6 + $0x168] sm:$0xff] %v2092
  %2100 = vst [vmem:[%s6 + $0x1b8] sm:$0xff] %v2093
  %2101 = vst [vmem:[%s6 + $0x208] sm:$0x1] %v2094
  %v2102 = vld [vmem:[%s2 + $0x30] sm:$0xff]
  %v2103 = vld [vmem:[%s2 + $0x68] sm:$0xff]
  %v2104 = vld [vmem:[%s2 + $0xa0] sm:$0xff]
  %v2105 = vld [vmem:[%s2 + $0xd8] sm:$0xff]
  %v2106 = vld [vmem:[%s2 + $0x110] sm:$0xff]
  %v2107 = vld [vmem:[%s2 + $0x148] sm:$0xff]
  %v2108 = vld [vmem:[%s2 + $0x180] sm:$0x1]
  %v2109 = vld [vmem:[%s4 + $0x6] sm:$0x1]
  %v2110 = vld [vmem:[%s5 + $0x6] sm:$0x1]
  %v2111 = vadd.f32 %v2102, %v2103
  %v2112 = vadd.f32 %v2111, %v2104
  %v2113 = vadd.f32 %v2112, %v2105
  %v2114 = vadd.f32 %v2113, %v2106
  %v2115 = vadd.f32 %v2114, %v2107
  %v2116 = vsel %vm1216, %v2108, 0.0
  %v2117 = vadd.f32 %v2115, %v2116
  %v2118 = vrot.slane %v2117, 4
  %v2119 = vadd.f32 %v2117, %v2118
  %v2120 = vrot.slane %v2119, 2
  %v2121 = vadd.f32 %v2119, %v2120
  %v2122 = vrot.slane %v2121, 1
  %v2123 = vadd.f32 %v2121, %v2122
  %v2124 = vmul.f32 %v2102, %v2102
  %v2125 = vmul.f32 %v2103, %v2103
  %v2126 = vmul.f32 %v2104, %v2104
  %v2127 = vmul.f32 %v2105, %v2105
  %v2128 = vmul.f32 %v2106, %v2106
  %v2129 = vmul.f32 %v2107, %v2107
  %v2130 = vmul.f32 %v2108, %v2108
  %v2131 = vadd.f32 %v2124, %v2125
  %v2132 = vadd.f32 %v2131, %v2126
  %v2133 = vadd.f32 %v2132, %v2127
  %v2134 = vadd.f32 %v2133, %v2128
  %v2135 = vadd.f32 %v2134, %v2129
  %v2136 = vsel %vm1216, %v2130, 0.0
  %v2137 = vadd.f32 %v2135, %v2136
  %v2138 = vrot.slane %v2137, 4
  %v2139 = vadd.f32 %v2137, %v2138
  %v2140 = vrot.slane %v2139, 2
  %v2141 = vadd.f32 %v2139, %v2140
  %v2142 = vrot.slane %v2141, 1
  %v2143 = vadd.f32 %v2141, %v2142
  %v2144 = vmul.f32 %v2123, 0.020408163
  %v2145 = vmul.f32 %v2143, 0.020408163
  %v2146 = vmul.f32 %v2144, %v2144
  %v2147 = vsub.f32 %v2145, %v2146
  %v2148 = vadd.f32 %v2147, 1e-05
  %v2149 = vrsqrt.pop %v2148
  %v2150 = vmul.f32 %v2109, %v2149
  %v2151 = vmul.f32 %v2144, %v2150
  %v2152 = vsub.f32 %v2110, %v2151
  %v2154 = vlaneseq
  %v2155 = vshrl.u32 %v2154, 7
  %v2156 = vsub.s32 0, %v2155
  %v2157 = vrot.slane %v2150, %v2156
  %v2159 = vmul.f32 %v2102, %v2157
  %v2160 = vmul.f32 %v2103, %v2157
  %v2161 = vmul.f32 %v2104, %v2157
  %v2162 = vmul.f32 %v2105, %v2157
  %v2163 = vmul.f32 %v2106, %v2157
  %v2164 = vmul.f32 %v2107, %v2157
  %v2165 = vmul.f32 %v2108, %v2157
  %v2167 = vlaneseq
  %v2168 = vshrl.u32 %v2167, 7
  %v2169 = vsub.s32 0, %v2168
  %v2170 = vrot.slane %v2152, %v2169
  %v2172 = vadd.f32 %v2159, %v2170
  %v2173 = vadd.f32 %v2160, %v2170
  %v2174 = vadd.f32 %v2161, %v2170
  %v2175 = vadd.f32 %v2162, %v2170
  %v2176 = vadd.f32 %v2163, %v2170
  %v2177 = vadd.f32 %v2164, %v2170
  %v2178 = vadd.f32 %v2165, %v2170
  %2179 = vst [vmem:[%s6 + $0x30] sm:$0xff] %v2172
  %2180 = vst [vmem:[%s6 + $0x80] sm:$0xff] %v2173
  %2181 = vst [vmem:[%s6 + $0xd0] sm:$0xff] %v2174
  %2182 = vst [vmem:[%s6 + $0x120] sm:$0xff] %v2175
  %2183 = vst [vmem:[%s6 + $0x170] sm:$0xff] %v2176
  %2184 = vst [vmem:[%s6 + $0x1c0] sm:$0xff] %v2177
  %2185 = vst [vmem:[%s6 + $0x210] sm:$0x1] %v2178
  // Predicated region
  $region26: #{module_forward.1} parent=0 // pred_check
    _
  $region27: #{module_forward.1} parent=0 // pred_check_branch
    %2187 = sbr.rel (0) target = $region29
  $region28: #{module_forward.1} parent=0 // pred_region
    _
  $region29: #{module_forward.1} parent=0 // pred_fallthru
    _
  // Predicated region
  $region30: #{module_forward.1} parent=0 // pred_check
    _
  $region31: #{module_forward.1} parent=0 // pred_check_branch
    %2189 = sbr.rel (0) target = $region33
  $region32: #{module_forward.1} parent=0 // pred_region
    _
  $region33: #{module_forward.1} parent=0 // pred_fallthru
    _

</llo_original>
